<compile_context>
chip_gen: v7x
topology: tpu7x:2x2x1
jax: 0.10.0
libtpu: 0.0.40
codegen_flags: <defaults>
</compile_context>

<pallas_src>
import functools

import jax
import jax.numpy as jnp
import numpy as np
from jax.experimental import pallas as pl
from jax.experimental.pallas import tpu as pltpu


# ---------------------------------------------------------------------------
# Model hyper-parameters (consistent with the module's constructor).
# ---------------------------------------------------------------------------
DATA_DIM = 40
LATENT_DIM = 2
SFTBETA = 4.5
ENCODER_WIDTH = 128   # lane-aligned stand-in for the default 400
ENCODER_DEPTH = 2     # number of hidden encoder/decoder Linear layers
BATCH = 128

LANE = 128                       # TPU lane width; per-layer block pad
N_BLOCKS = 8                     # 9 Linear layers, z_mu|z_logvar share a block
W_COLS = N_BLOCKS * LANE         # packed slab width (1024)

# column-block index of each layer inside the packed weight / bias slabs
B_EFC, B_EL0, B_EL1, B_ZHEAD, B_DFC, B_DL0, B_DL1, B_XMU = range(N_BLOCKS)

# lane layout of the packed input block (x | eps) and output block
EPS_COL = 64                          # eps lives at cols 64..65 of the input
COL_XMU = 0                           # x_mu      -> output cols [0, 40)
COL_Z = DATA_DIM                      # z         -> output cols [40, 42)
COL_ZMU = COL_Z + LATENT_DIM          # z_mu      -> output cols [42, 44)
COL_ZLV = COL_ZMU + LATENT_DIM        # z_logvar  -> output cols [44, 46)
COL_PAD = COL_ZLV + LATENT_DIM        # cols [46, 128) zero-padded


def _softplus_beta(v, beta):
    """PyTorch F.softplus(v, beta) with the threshold=20 linear fallback."""
    bv = beta * v
    safe = jnp.minimum(bv, 20.0)
    return jnp.where(bv > 20.0, v, jnp.log1p(jnp.exp(safe)) / beta)


# ---------------------------------------------------------------------------
# Kernel: whole encoder -> reparameterize -> decoder pipeline, one invocation
# per batch row tile.
# ---------------------------------------------------------------------------
def neural_vae_kernel(xe_ref, w_ref, b_ref, out_ref, *, sftbeta):
    tb = out_ref.shape[0]

    def mm(h, blk):
        c0 = blk * LANE
        w = w_ref[:, c0:c0 + LANE]                       # bf16 [128, 128]
        b = b_ref[:, c0:c0 + LANE]                       # f32  [1, 128]
        return jnp.dot(h.astype(w.dtype), w,
                       preferred_element_type=jnp.float32) + b

    sp = functools.partial(_softplus_beta, beta=sftbeta)

    xin = xe_ref[...]     # [tb, 128] f32: x in cols 0..39, eps in cols 64..65

    # ---- encode ----
    # The eps columns (64..65) contribute nothing to encoder_fc: weight rows
    # 40..127 of the packed block are zero.
    h = sp(mm(xin, B_EFC))                  # encoder_fc
    h = sp(mm(h, B_EL0))                    # encoder_linears[0]
    h = sp(mm(h, B_EL1))                    # encoder_linears[1]
    head = mm(h, B_ZHEAD)                   # z_mu cols 0..1 | z_logvar cols 2..3

    z_mu = head[:, 0:LATENT_DIM]                        # [tb, 2] f32
    z_logvar = head[:, LATENT_DIM:2 * LATENT_DIM]       # [tb, 2] f32
    eps = xin[:, EPS_COL:EPS_COL + LATENT_DIM]          # [tb, 2] f32

    # ---- reparameterize (Normal(mu, std).rsample with external eps) ----
    z = z_mu + jnp.exp(0.5 * z_logvar) * eps            # [tb, 2] f32

    # Early stores: release head/z live ranges before the decoder runs.
    out_ref[:, COL_Z:COL_Z + LATENT_DIM] = z
    out_ref[:, COL_ZMU:COL_ZMU + LATENT_DIM] = z_mu
    out_ref[:, COL_ZLV:COL_ZLV + LATENT_DIM] = z_logvar
    out_ref[:, COL_PAD:] = jnp.zeros((tb, LANE - COL_PAD), jnp.float32)

    # ---- decode ----
    # decoder_fc has K = latent_dim = 2: two VPU broadcast FMAs beat an MXU
    # matmul that reduces over 126 all-zero K rows.
    c0 = B_DFC * LANE
    w0 = w_ref[0:1, c0:c0 + LANE].astype(jnp.float32)   # [1, 128]
    w1 = w_ref[1:2, c0:c0 + LANE].astype(jnp.float32)   # [1, 128]
    b_dfc = b_ref[:, c0:c0 + LANE]                      # [1, 128]
    hd = sp(z[:, 0:1] * w0 + z[:, 1:2] * w1 + b_dfc)    # decoder_fc
    hd = sp(mm(hd, B_DL0))                  # decoder_linears[0]
    hd = sp(mm(hd, B_DL1))                  # decoder_linears[1]
    x_mu = mm(hd, B_XMU)                    # fc_x_mu (useful cols 0..39)

    out_ref[:, COL_XMU:COL_XMU + DATA_DIM] = x_mu[:, 0:DATA_DIM]


# ---------------------------------------------------------------------------
# Parameter packing (done ONCE per model, outside the per-call path).
# ---------------------------------------------------------------------------
def pack_params(params, w_dtype=jnp.bfloat16):
    (we0, be0), (we1, be1), (we2, be2), (wmu, bmu), (wlv, blv), \
        (wd0, bd0), (wd1, bd1), (wd2, bd2), (wxm, bxm) = params

    def blk(w, b):
        wp = jnp.zeros((LANE, LANE), jnp.float32)
        wp = wp.at[: w.shape[0], : w.shape[1]].set(w)
        bp = jnp.zeros((1, LANE), jnp.float32)
        bp = bp.at[:, : b.shape[1]].set(b)
        return wp, bp

    # fused z head: z_mu -> cols [0, 2), z_logvar -> cols [2, 4)
    w_head = jnp.zeros((LANE, LANE), jnp.float32)
    w_head = w_head.at[: wmu.shape[0], 0:LATENT_DIM].set(wmu)
    w_head = w_head.at[: wlv.shape[0], LATENT_DIM:2 * LATENT_DIM].set(wlv)
    b_head = jnp.zeros((1, LANE), jnp.float32)
    b_head = b_head.at[:, 0:LATENT_DIM].set(bmu)
    b_head = b_head.at[:, LATENT_DIM:2 * LATENT_DIM].set(blv)

    blocks = [blk(we0, be0), blk(we1, be1), blk(we2, be2), (w_head, b_head),
              blk(wd0, bd0), blk(wd1, bd1), blk(wd2, bd2), blk(wxm, bxm)]
    w_slab = jnp.concatenate([w for w, _ in blocks], axis=1).astype(w_dtype)
    b_slab = jnp.concatenate([b for _, b in blocks], axis=1)
    return w_slab, b_slab            # [128, 1024] bf16, [1, 1024] f32


# ---------------------------------------------------------------------------
# Batch tiling: big tiles for big batches, >=2 tiles for small ones (v7x TCs).
# ---------------------------------------------------------------------------
def _round_up(v, m):
    return -(-v // m) * m


def _tile_plan(batch, batch_tile):
    if batch >= 2 * batch_tile:
        tb = batch_tile
    elif batch >= 16:
        tb = _round_up(_round_up(batch, 2) // 2, 8)   # ~half batch, mult of 8
    else:
        tb = _round_up(batch, 8)
    n_tiles = -(-batch // tb)
    return tb, n_tiles, tb * n_tiles


# ---------------------------------------------------------------------------
# Wrapper: one packed lane-dense input block, one compact output block.
# ---------------------------------------------------------------------------
def neural_vae_forward(x, eps, w_slab, b_slab, *, sftbeta=SFTBETA,
                       batch_tile=256):
    """Full VAE forward in one Pallas kernel.

    Returns (z, x_mu, (z_mu, z_logvar)) mirroring NeuralVAE.forward.
    """
    batch = x.shape[0]
    tb, n_tiles, batch_pad = _tile_plan(batch, batch_tile)

    # pack x | eps into one lane-dense [batch_pad, 128] block
    xe = jnp.zeros((batch_pad, LANE), jnp.float32)
    xe = xe.at[:batch, :DATA_DIM].set(x)
    xe = xe.at[:batch, EPS_COL:EPS_COL + LATENT_DIM].set(eps)

    kernel = functools.partial(neural_vae_kernel, sftbeta=sftbeta)
    out = pl.pallas_call(
        kernel,
        out_shape=jax.ShapeDtypeStruct((batch_pad, LANE), jnp.float32),
        grid=(n_tiles,),
        in_specs=[
            pl.BlockSpec((tb, LANE), lambda i: (i, 0)),        # x|eps block
            pl.BlockSpec((LANE, W_COLS), lambda i: (0, 0)),    # weight slab
            pl.BlockSpec((1, W_COLS), lambda i: (0, 0)),       # bias slab
        ],
        out_specs=pl.BlockSpec((tb, LANE), lambda i: (i, 0)),
        compiler_params=pltpu.CompilerParams(
            dimension_semantics=("parallel",)),    # shard row tiles over TCs
    )(xe, w_slab, b_slab)

    x_mu = out[:batch, COL_XMU:COL_XMU + DATA_DIM]
    z = out[:batch, COL_Z:COL_Z + LATENT_DIM]
    z_mu = out[:batch, COL_ZMU:COL_ZMU + LATENT_DIM]
    z_logvar = out[:batch, COL_ZLV:COL_ZLV + LATENT_DIM]
    return z, x_mu, (z_mu, z_logvar)


# ---------------------------------------------------------------------------
# Deterministic parameter init (PyTorch Linear style: U(-1/sqrt(in), 1/sqrt(in)))
# ---------------------------------------------------------------------------
def init_linear(key, in_dim, out_dim):
    kw, kb = jax.random.split(key)
    bound = 1.0 / np.sqrt(in_dim)
    w = jax.random.uniform(kw, (in_dim, out_dim), jnp.float32, -bound, bound)
    b = jax.random.uniform(kb, (1, out_dim), jnp.float32, -bound, bound)
    return w, b


def build_params(key):
    keys = jax.random.split(key, 10)
    params = []
    params.append(init_linear(keys[0], DATA_DIM, ENCODER_WIDTH))      # encoder_fc
    params.append(init_linear(keys[1], ENCODER_WIDTH, ENCODER_WIDTH)) # enc_lin[0]
    params.append(init_linear(keys[2], ENCODER_WIDTH, ENCODER_WIDTH)) # enc_lin[1]
    params.append(init_linear(keys[3], ENCODER_WIDTH, LATENT_DIM))    # fc_z_mu
    params.append(init_linear(keys[4], ENCODER_WIDTH, LATENT_DIM))    # fc_z_logvar
    params.append(init_linear(keys[5], LATENT_DIM, ENCODER_WIDTH))    # decoder_fc
    params.append(init_linear(keys[6], ENCODER_WIDTH, ENCODER_WIDTH)) # dec_lin[0]
    params.append(init_linear(keys[7], ENCODER_WIDTH, ENCODER_WIDTH)) # dec_lin[1]
    params.append(init_linear(keys[8], ENCODER_WIDTH, DATA_DIM))      # fc_x_mu
    return params


# ---------------------------------------------------------------------------
# Pure-JAX reference (same bf16-operand / f32-accumulate numerics as kernel).
# ---------------------------------------------------------------------------
def reference_forward(x, eps, params, sftbeta=SFTBETA):
    def lin(h, w, b):
        return jnp.dot(h.astype(jnp.bfloat16), w.astype(jnp.bfloat16),
                       preferred_element_type=jnp.float32) + b
    sp = lambda v: _softplus_beta(v, sftbeta)
    (we0, be0), (we1, be1), (we2, be2), (wmu, bmu), (wlv, blv), \
        (wd0, bd0), (wd1, bd1), (wd2, bd2), (wxm, bxm) = params
    h = sp(lin(x, we0, be0))
    h = sp(lin(h, we1, be1))
    h = sp(lin(h, we2, be2))
    z_mu = lin(h, wmu, bmu)
    z_logvar = lin(h, wlv, blv)
    z = z_mu + jnp.exp(0.5 * z_logvar) * eps
    # decoder_fc mirrors the kernel's VPU path: f32 z times bf16-rounded weights
    wd0_q = wd0.astype(jnp.bfloat16).astype(jnp.float32)
    hd = sp(jnp.dot(z, wd0_q) + bd0)
    hd = sp(lin(hd, wd1, bd1))
    hd = sp(lin(hd, wd2, bd2))
    x_mu = lin(hd, wxm, bxm)
    return z, x_mu, (z_mu, z_logvar)


if __name__ == "__main__":
    key = jax.random.PRNGKey(0)
    k_x, k_eps, k_params = jax.random.split(key, 3)

    x = jax.random.normal(k_x, (BATCH, DATA_DIM), jnp.float32)
    eps = jax.random.normal(k_eps, (BATCH, LATENT_DIM), jnp.float32)
    params = build_params(k_params)

    # pack parameters ONCE (hoisted out of the per-forward path)
    w_slab, b_slab = pack_params(params)
    jax.block_until_ready((w_slab, b_slab))

    fwd = jax.jit(functools.partial(neural_vae_forward,
                                    sftbeta=SFTBETA, batch_tile=256))
    z, x_mu, (z_mu, z_logvar) = fwd(x, eps, w_slab, b_slab)
    jax.block_until_ready((z, x_mu, z_mu, z_logvar))

    # sanity check vs. pure-JAX reference (same bf16-matmul numerics)
    z_r, x_mu_r, (z_mu_r, z_logvar_r) = reference_forward(x, eps, params)
    np.testing.assert_allclose(np.asarray(z), np.asarray(z_r), rtol=1e-3, atol=1e-3)
    np.testing.assert_allclose(np.asarray(x_mu), np.asarray(x_mu_r), rtol=1e-3, atol=1e-3)
    np.testing.assert_allclose(np.asarray(z_mu), np.asarray(z_mu_r), rtol=1e-3, atol=1e-3)
    np.testing.assert_allclose(np.asarray(z_logvar), np.asarray(z_logvar_r), rtol=1e-3, atol=1e-3)

    print("KERNEL_OK")
</pallas_src>

<mosaic_0001>
module attributes {stable_mosaic.version = 11 : i64} {
  func.func @neural_vae_kernel(%arg0: i32, %arg1: memref<64x128xf32, #tpu.memory_space<vmem>>, %arg2: memref<128x1024xbf16, #tpu.memory_space<vmem>>, %arg3: memref<1x1024xf32, #tpu.memory_space<vmem>>, %arg4: memref<64x128xf32, #tpu.memory_space<vmem>>) attributes {dimension_semantics = [#tpu.dimension_semantics<parallel>], iteration_bounds = array<i64: 2>, scalar_prefetch = 0 : i64, scratch_operands = 0 : i64, tpu.core_type = #tpu.core_type<tc>, window_params = [{transform_indices = @transform_0, window_bounds = array<i64: 64, 128>}, {pipeline_mode = #tpu.pipeline_mode<synchronous>, transform_indices = @transform_1, window_bounds = array<i64: 128, 1024>}, {pipeline_mode = #tpu.pipeline_mode<synchronous>, transform_indices = @transform_2, window_bounds = array<i64: 1, 1024>}, {transform_indices = @transform_3, window_bounds = array<i64: 64, 128>}]} {
    %c0 = arith.constant 0 : index
    %c0_0 = arith.constant 0 : index
    %0 = vector.load %arg1[%c0, %c0_0] : memref<64x128xf32, #tpu.memory_space<vmem>>, vector<64x128xf32>
    %c0_1 = arith.constant 0 : index
    %c0_2 = arith.constant 0 : index
    %1 = vector.load %arg2[%c0_1, %c0_2] : memref<128x1024xbf16, #tpu.memory_space<vmem>>, vector<128x128xbf16>
    %c0_3 = arith.constant 0 : index
    %c0_4 = arith.constant 0 : index
    %2 = vector.load %arg3[%c0_3, %c0_4] : memref<1x1024xf32, #tpu.memory_space<vmem>>, vector<1x128xf32>
    %3 = arith.truncf %0 : vector<64x128xf32> to vector<64x128xbf16>
    %cst = arith.constant dense<0.000000e+00> : vector<64x128xf32>
    %4 = tpu.matmul %3, %1, %cst {dimension_numbers = #tpu.dot_dimension_numbers<[1], [0], [0], [1], [0, 0, 1, 1], [], []>} : vector<64x128xbf16>, vector<128x128xbf16>, vector<64x128xf32> -> vector<64x128xf32>
    %5 = vector.broadcast %2 : vector<1x128xf32> to vector<64x128xf32>
    %6 = arith.addf %4, %5 : vector<64x128xf32>
    %cst_5 = arith.constant 4.500000e+00 : f32
    %7 = vector.broadcast %cst_5 : f32 to vector<64x128xf32>
    %8 = arith.mulf %7, %6 : vector<64x128xf32>
    %cst_6 = arith.constant 2.000000e+01 : f32
    %9 = vector.broadcast %cst_6 : f32 to vector<64x128xf32>
    %10 = arith.minimumf %8, %9 : vector<64x128xf32>
    %cst_7 = arith.constant 2.000000e+01 : f32
    %11 = vector.broadcast %cst_7 : f32 to vector<64x128xf32>
    %12 = arith.cmpf ogt, %8, %11 : vector<64x128xf32>
    %13 = math.exp %10 : vector<64x128xf32>
    %14 = math.log1p %13 : vector<64x128xf32>
    %cst_8 = arith.constant 4.500000e+00 : f32
    %15 = vector.broadcast %cst_8 : f32 to vector<64x128xf32>
    %16 = arith.divf %14, %15 : vector<64x128xf32>
    %17 = arith.select %12, %6, %16 : vector<64x128xi1>, vector<64x128xf32>
    %c0_9 = arith.constant 0 : index
    %c128 = arith.constant 128 : index
    %18 = vector.load %arg2[%c0_9, %c128] : memref<128x1024xbf16, #tpu.memory_space<vmem>>, vector<128x128xbf16>
    %c0_10 = arith.constant 0 : index
    %c128_11 = arith.constant 128 : index
    %19 = vector.load %arg3[%c0_10, %c128_11] : memref<1x1024xf32, #tpu.memory_space<vmem>>, vector<1x128xf32>
    %20 = arith.truncf %17 : vector<64x128xf32> to vector<64x128xbf16>
    %cst_12 = arith.constant dense<0.000000e+00> : vector<64x128xf32>
    %21 = tpu.matmul %20, %18, %cst_12 {dimension_numbers = #tpu.dot_dimension_numbers<[1], [0], [0], [1], [0, 0, 1, 1], [], []>} : vector<64x128xbf16>, vector<128x128xbf16>, vector<64x128xf32> -> vector<64x128xf32>
    %22 = vector.broadcast %19 : vector<1x128xf32> to vector<64x128xf32>
    %23 = arith.addf %21, %22 : vector<64x128xf32>
    %cst_13 = arith.constant 4.500000e+00 : f32
    %24 = vector.broadcast %cst_13 : f32 to vector<64x128xf32>
    %25 = arith.mulf %24, %23 : vector<64x128xf32>
    %cst_14 = arith.constant 2.000000e+01 : f32
    %26 = vector.broadcast %cst_14 : f32 to vector<64x128xf32>
    %27 = arith.minimumf %25, %26 : vector<64x128xf32>
    %cst_15 = arith.constant 2.000000e+01 : f32
    %28 = vector.broadcast %cst_15 : f32 to vector<64x128xf32>
    %29 = arith.cmpf ogt, %25, %28 : vector<64x128xf32>
    %30 = math.exp %27 : vector<64x128xf32>
    %31 = math.log1p %30 : vector<64x128xf32>
    %cst_16 = arith.constant 4.500000e+00 : f32
    %32 = vector.broadcast %cst_16 : f32 to vector<64x128xf32>
    %33 = arith.divf %31, %32 : vector<64x128xf32>
    %34 = arith.select %29, %23, %33 : vector<64x128xi1>, vector<64x128xf32>
    %c0_17 = arith.constant 0 : index
    %c256 = arith.constant 256 : index
    %35 = vector.load %arg2[%c0_17, %c256] : memref<128x1024xbf16, #tpu.memory_space<vmem>>, vector<128x128xbf16>
    %c0_18 = arith.constant 0 : index
    %c256_19 = arith.constant 256 : index
    %36 = vector.load %arg3[%c0_18, %c256_19] : memref<1x1024xf32, #tpu.memory_space<vmem>>, vector<1x128xf32>
    %37 = arith.truncf %34 : vector<64x128xf32> to vector<64x128xbf16>
    %cst_20 = arith.constant dense<0.000000e+00> : vector<64x128xf32>
    %38 = tpu.matmul %37, %35, %cst_20 {dimension_numbers = #tpu.dot_dimension_numbers<[1], [0], [0], [1], [0, 0, 1, 1], [], []>} : vector<64x128xbf16>, vector<128x128xbf16>, vector<64x128xf32> -> vector<64x128xf32>
    %39 = vector.broadcast %36 : vector<1x128xf32> to vector<64x128xf32>
    %40 = arith.addf %38, %39 : vector<64x128xf32>
    %cst_21 = arith.constant 4.500000e+00 : f32
    %41 = vector.broadcast %cst_21 : f32 to vector<64x128xf32>
    %42 = arith.mulf %41, %40 : vector<64x128xf32>
    %cst_22 = arith.constant 2.000000e+01 : f32
    %43 = vector.broadcast %cst_22 : f32 to vector<64x128xf32>
    %44 = arith.minimumf %42, %43 : vector<64x128xf32>
    %cst_23 = arith.constant 2.000000e+01 : f32
    %45 = vector.broadcast %cst_23 : f32 to vector<64x128xf32>
    %46 = arith.cmpf ogt, %42, %45 : vector<64x128xf32>
    %47 = math.exp %44 : vector<64x128xf32>
    %48 = math.log1p %47 : vector<64x128xf32>
    %cst_24 = arith.constant 4.500000e+00 : f32
    %49 = vector.broadcast %cst_24 : f32 to vector<64x128xf32>
    %50 = arith.divf %48, %49 : vector<64x128xf32>
    %51 = arith.select %46, %40, %50 : vector<64x128xi1>, vector<64x128xf32>
    %c0_25 = arith.constant 0 : index
    %c384 = arith.constant 384 : index
    %52 = vector.load %arg2[%c0_25, %c384] : memref<128x1024xbf16, #tpu.memory_space<vmem>>, vector<128x128xbf16>
    %c0_26 = arith.constant 0 : index
    %c384_27 = arith.constant 384 : index
    %53 = vector.load %arg3[%c0_26, %c384_27] : memref<1x1024xf32, #tpu.memory_space<vmem>>, vector<1x128xf32>
    %54 = arith.truncf %51 : vector<64x128xf32> to vector<64x128xbf16>
    %cst_28 = arith.constant dense<0.000000e+00> : vector<64x128xf32>
    %55 = tpu.matmul %54, %52, %cst_28 {dimension_numbers = #tpu.dot_dimension_numbers<[1], [0], [0], [1], [0, 0, 1, 1], [], []>} : vector<64x128xbf16>, vector<128x128xbf16>, vector<64x128xf32> -> vector<64x128xf32>
    %56 = vector.broadcast %53 : vector<1x128xf32> to vector<64x128xf32>
    %57 = arith.addf %55, %56 : vector<64x128xf32>
    %58 = vector.extract_strided_slice %57 {offsets = [0, 0], sizes = [64, 2], strides = [1, 1]} : vector<64x128xf32> to vector<64x2xf32>
    %59 = vector.extract_strided_slice %57 {offsets = [0, 2], sizes = [64, 2], strides = [1, 1]} : vector<64x128xf32> to vector<64x2xf32>
    %60 = vector.extract_strided_slice %0 {offsets = [0, 64], sizes = [64, 2], strides = [1, 1]} : vector<64x128xf32> to vector<64x2xf32>
    %cst_29 = arith.constant 5.000000e-01 : f32
    %61 = vector.broadcast %cst_29 : f32 to vector<64x2xf32>
    %62 = arith.mulf %61, %59 : vector<64x2xf32>
    %63 = math.exp %62 : vector<64x2xf32>
    %64 = arith.mulf %63, %60 : vector<64x2xf32>
    %65 = arith.addf %58, %64 : vector<64x2xf32>
    %c0_30 = arith.constant 0 : index
    %c40 = arith.constant 40 : index
    %66 = vector.load %arg4[%c0_30, %c40] : memref<64x128xf32, #tpu.memory_space<vmem>>, vector<64x2xf32>
    tpu.vector_store %arg4[%c0_30, %c40], %65 {strides = array<i32>} : memref<64x128xf32, #tpu.memory_space<vmem>>, vector<64x2xf32>,
    %c0_31 = arith.constant 0 : index
    %c42 = arith.constant 42 : index
    %67 = vector.load %arg4[%c0_31, %c42] : memref<64x128xf32, #tpu.memory_space<vmem>>, vector<64x2xf32>
    tpu.vector_store %arg4[%c0_31, %c42], %58 {strides = array<i32>} : memref<64x128xf32, #tpu.memory_space<vmem>>, vector<64x2xf32>,
    %c0_32 = arith.constant 0 : index
    %c44 = arith.constant 44 : index
    %68 = vector.load %arg4[%c0_32, %c44] : memref<64x128xf32, #tpu.memory_space<vmem>>, vector<64x2xf32>
    tpu.vector_store %arg4[%c0_32, %c44], %59 {strides = array<i32>} : memref<64x128xf32, #tpu.memory_space<vmem>>, vector<64x2xf32>,
    %cst_33 = arith.constant 0.000000e+00 : f32
    %69 = vector.broadcast %cst_33 : f32 to vector<64x82xf32>
    %c0_34 = arith.constant 0 : index
    %c46 = arith.constant 46 : index
    %70 = vector.load %arg4[%c0_34, %c46] : memref<64x128xf32, #tpu.memory_space<vmem>>, vector<64x82xf32>
    tpu.vector_store %arg4[%c0_34, %c46], %69 {strides = array<i32>} : memref<64x128xf32, #tpu.memory_space<vmem>>, vector<64x82xf32>,
    %c0_35 = arith.constant 0 : index
    %c512 = arith.constant 512 : index
    %71 = vector.load %arg2[%c0_35, %c512] : memref<128x1024xbf16, #tpu.memory_space<vmem>>, vector<1x128xbf16>
    %72 = arith.extf %71 : vector<1x128xbf16> to vector<1x128xf32>
    %c1 = arith.constant 1 : index
    %c512_36 = arith.constant 512 : index
    %73 = vector.load %arg2[%c1, %c512_36] : memref<128x1024xbf16, #tpu.memory_space<vmem>>, vector<1x128xbf16>
    %74 = arith.extf %73 : vector<1x128xbf16> to vector<1x128xf32>
    %c0_37 = arith.constant 0 : index
    %c512_38 = arith.constant 512 : index
    %75 = vector.load %arg3[%c0_37, %c512_38] : memref<1x1024xf32, #tpu.memory_space<vmem>>, vector<1x128xf32>
    %76 = vector.extract_strided_slice %65 {offsets = [0, 0], sizes = [64, 1], strides = [1, 1]} : vector<64x2xf32> to vector<64x1xf32>
    %77 = vector.broadcast %76 : vector<64x1xf32> to vector<64x128xf32>
    %78 = vector.broadcast %72 : vector<1x128xf32> to vector<64x128xf32>
    %79 = arith.mulf %77, %78 : vector<64x128xf32>
    %80 = vector.extract_strided_slice %65 {offsets = [0, 1], sizes = [64, 1], strides = [1, 1]} : vector<64x2xf32> to vector<64x1xf32>
    %81 = vector.broadcast %80 : vector<64x1xf32> to vector<64x128xf32>
    %82 = vector.broadcast %74 : vector<1x128xf32> to vector<64x128xf32>
    %83 = arith.mulf %81, %82 : vector<64x128xf32>
    %84 = arith.addf %79, %83 : vector<64x128xf32>
    %85 = vector.broadcast %75 : vector<1x128xf32> to vector<64x128xf32>
    %86 = arith.addf %84, %85 : vector<64x128xf32>
    %cst_39 = arith.constant 4.500000e+00 : f32
    %87 = vector.broadcast %cst_39 : f32 to vector<64x128xf32>
    %88 = arith.mulf %87, %86 : vector<64x128xf32>
    %cst_40 = arith.constant 2.000000e+01 : f32
    %89 = vector.broadcast %cst_40 : f32 to vector<64x128xf32>
    %90 = arith.minimumf %88, %89 : vector<64x128xf32>
    %cst_41 = arith.constant 2.000000e+01 : f32
    %91 = vector.broadcast %cst_41 : f32 to vector<64x128xf32>
    %92 = arith.cmpf ogt, %88, %91 : vector<64x128xf32>
    %93 = math.exp %90 : vector<64x128xf32>
    %94 = math.log1p %93 : vector<64x128xf32>
    %cst_42 = arith.constant 4.500000e+00 : f32
    %95 = vector.broadcast %cst_42 : f32 to vector<64x128xf32>
    %96 = arith.divf %94, %95 : vector<64x128xf32>
    %97 = arith.select %92, %86, %96 : vector<64x128xi1>, vector<64x128xf32>
    %c0_43 = arith.constant 0 : index
    %c640 = arith.constant 640 : index
    %98 = vector.load %arg2[%c0_43, %c640] : memref<128x1024xbf16, #tpu.memory_space<vmem>>, vector<128x128xbf16>
    %c0_44 = arith.constant 0 : index
    %c640_45 = arith.constant 640 : index
    %99 = vector.load %arg3[%c0_44, %c640_45] : memref<1x1024xf32, #tpu.memory_space<vmem>>, vector<1x128xf32>
    %100 = arith.truncf %97 : vector<64x128xf32> to vector<64x128xbf16>
    %cst_46 = arith.constant dense<0.000000e+00> : vector<64x128xf32>
    %101 = tpu.matmul %100, %98, %cst_46 {dimension_numbers = #tpu.dot_dimension_numbers<[1], [0], [0], [1], [0, 0, 1, 1], [], []>} : vector<64x128xbf16>, vector<128x128xbf16>, vector<64x128xf32> -> vector<64x128xf32>
    %102 = vector.broadcast %99 : vector<1x128xf32> to vector<64x128xf32>
    %103 = arith.addf %101, %102 : vector<64x128xf32>
    %cst_47 = arith.constant 4.500000e+00 : f32
    %104 = vector.broadcast %cst_47 : f32 to vector<64x128xf32>
    %105 = arith.mulf %104, %103 : vector<64x128xf32>
    %cst_48 = arith.constant 2.000000e+01 : f32
    %106 = vector.broadcast %cst_48 : f32 to vector<64x128xf32>
    %107 = arith.minimumf %105, %106 : vector<64x128xf32>
    %cst_49 = arith.constant 2.000000e+01 : f32
    %108 = vector.broadcast %cst_49 : f32 to vector<64x128xf32>
    %109 = arith.cmpf ogt, %105, %108 : vector<64x128xf32>
    %110 = math.exp %107 : vector<64x128xf32>
    %111 = math.log1p %110 : vector<64x128xf32>
    %cst_50 = arith.constant 4.500000e+00 : f32
    %112 = vector.broadcast %cst_50 : f32 to vector<64x128xf32>
    %113 = arith.divf %111, %112 : vector<64x128xf32>
    %114 = arith.select %109, %103, %113 : vector<64x128xi1>, vector<64x128xf32>
    %c0_51 = arith.constant 0 : index
    %c768 = arith.constant 768 : index
    %115 = vector.load %arg2[%c0_51, %c768] : memref<128x1024xbf16, #tpu.memory_space<vmem>>, vector<128x128xbf16>
    %c0_52 = arith.constant 0 : index
    %c768_53 = arith.constant 768 : index
    %116 = vector.load %arg3[%c0_52, %c768_53] : memref<1x1024xf32, #tpu.memory_space<vmem>>, vector<1x128xf32>
    %117 = arith.truncf %114 : vector<64x128xf32> to vector<64x128xbf16>
    %cst_54 = arith.constant dense<0.000000e+00> : vector<64x128xf32>
    %118 = tpu.matmul %117, %115, %cst_54 {dimension_numbers = #tpu.dot_dimension_numbers<[1], [0], [0], [1], [0, 0, 1, 1], [], []>} : vector<64x128xbf16>, vector<128x128xbf16>, vector<64x128xf32> -> vector<64x128xf32>
    %119 = vector.broadcast %116 : vector<1x128xf32> to vector<64x128xf32>
    %120 = arith.addf %118, %119 : vector<64x128xf32>
    %cst_55 = arith.constant 4.500000e+00 : f32
    %121 = vector.broadcast %cst_55 : f32 to vector<64x128xf32>
    %122 = arith.mulf %121, %120 : vector<64x128xf32>
    %cst_56 = arith.constant 2.000000e+01 : f32
    %123 = vector.broadcast %cst_56 : f32 to vector<64x128xf32>
    %124 = arith.minimumf %122, %123 : vector<64x128xf32>
    %cst_57 = arith.constant 2.000000e+01 : f32
    %125 = vector.broadcast %cst_57 : f32 to vector<64x128xf32>
    %126 = arith.cmpf ogt, %122, %125 : vector<64x128xf32>
    %127 = math.exp %124 : vector<64x128xf32>
    %128 = math.log1p %127 : vector<64x128xf32>
    %cst_58 = arith.constant 4.500000e+00 : f32
    %129 = vector.broadcast %cst_58 : f32 to vector<64x128xf32>
    %130 = arith.divf %128, %129 : vector<64x128xf32>
    %131 = arith.select %126, %120, %130 : vector<64x128xi1>, vector<64x128xf32>
    %c0_59 = arith.constant 0 : index
    %c896 = arith.constant 896 : index
    %132 = vector.load %arg2[%c0_59, %c896] : memref<128x1024xbf16, #tpu.memory_space<vmem>>, vector<128x128xbf16>
    %c0_60 = arith.constant 0 : index
    %c896_61 = arith.constant 896 : index
    %133 = vector.load %arg3[%c0_60, %c896_61] : memref<1x1024xf32, #tpu.memory_space<vmem>>, vector<1x128xf32>
    %134 = arith.truncf %131 : vector<64x128xf32> to vector<64x128xbf16>
    %cst_62 = arith.constant dense<0.000000e+00> : vector<64x128xf32>
    %135 = tpu.matmul %134, %132, %cst_62 {dimension_numbers = #tpu.dot_dimension_numbers<[1], [0], [0], [1], [0, 0, 1, 1], [], []>} : vector<64x128xbf16>, vector<128x128xbf16>, vector<64x128xf32> -> vector<64x128xf32>
    %136 = vector.broadcast %133 : vector<1x128xf32> to vector<64x128xf32>
    %137 = arith.addf %135, %136 : vector<64x128xf32>
    %138 = vector.extract_strided_slice %137 {offsets = [0, 0], sizes = [64, 40], strides = [1, 1]} : vector<64x128xf32> to vector<64x40xf32>
    %c0_63 = arith.constant 0 : index
    %c0_64 = arith.constant 0 : index
    %139 = vector.load %arg4[%c0_63, %c0_64] : memref<64x128xf32, #tpu.memory_space<vmem>>, vector<64x40xf32>
    tpu.vector_store %arg4[%c0_63, %c0_64], %138 {strides = array<i32>} : memref<64x128xf32, #tpu.memory_space<vmem>>, vector<64x40xf32>,
    return
  }
  func.func @transform_0(%arg0: i32) -> (i32, i32) {
    %c0_i32 = arith.constant 0 : i32
    %c0_i32_0 = arith.constant 0 : i32
    return %arg0, %c0_i32 : i32, i32
  }
  func.func @transform_1(%arg0: i32) -> (i32, i32) {
    %c0_i32 = arith.constant 0 : i32
    %c0_i32_0 = arith.constant 0 : i32
    %c0_i32_1 = arith.constant 0 : i32
    return %c0_i32, %c0_i32_0 : i32, i32
  }
  func.func @transform_2(%arg0: i32) -> (i32, i32) {
    %c0_i32 = arith.constant 0 : i32
    %c0_i32_0 = arith.constant 0 : i32
    %c0_i32_1 = arith.constant 0 : i32
    return %c0_i32, %c0_i32_0 : i32, i32
  }
  func.func @transform_3(%arg0: i32) -> (i32, i32) {
    %c0_i32 = arith.constant 0 : i32
    %c0_i32_0 = arith.constant 0 : i32
    return %arg0, %c0_i32 : i32, i32
  }
}

</mosaic_0001>

<llo_original>
// kernel: neural_vae_forward.1
$region0: #{neural_vae_forward.1}
  #allocation0 [shape = 'u32[]', space=smem, size = 0x4, offset = 0x4, fixed_abs, tag = 'smem constant byte address 0x4 - core index']
  #allocation1 [shape = 'u32[144,128]{1,0:T(1,128)}', space=vmem, size = 0x12000, scoped, tag = 'internal scratch']
  %s0 = inlined_call_operand.vmem [shape: f32[128,128], index: 0, kind: input, shape index: {}]
  %s1 = inlined_call_operand.vmem [shape: bf16[128,1024], index: 1, kind: input, shape index: {}]
  %s2 = inlined_call_operand.vmem [shape: f32[1,1024], index: 2, kind: input, shape index: {}]
  %s3 = inlined_call_operand.vmem [shape: f32[128,128], index: 3, kind: output, shape index: {}]
  %s4 = sld [smem:[#allocation0]]
  $region45: #{neural_vae_forward.1} parent=0
    _
  %s6 = ssub.s32 1, %s4
  %s7 = scalar_select 0, %s6, %s4
  loop: start=0, step=1, limit=4
  $region2: #{neural_vae_forward.1} parent=0 // loop_pre_header
    _
  $region3: #{neural_vae_forward.1} parent=0 // loop_header
    %s9 = sphi 0, %s13
    %p10 = scmp.ge.s32.totalorder %s9, 4
    %s19 = sphi 0, %s21
    %s22 = sphi 0, %s19
    %s23 = sphi 0, %s22
    %s39 = sphi 0, %s23
    %s43 = sphi 0, %s43
    %s45 = sphi 0, %s43
    %s46 = sphi 0, %s45
    %s60 = sphi 0, %s46
    %s64 = sphi 0, %s64
    %s66 = sphi 0, %s64
    %s67 = sphi 0, %s66
    %s81 = sphi 0, %s67
    %s87 = sphi 0, %s89
    %s90 = sphi 0, %s87
    %s91 = sphi 0, %s90
    %s107 = sphi 0, %s91
  $region4: #{neural_vae_forward.1} parent=0 // loop_header_branch
    %12 = sbr.rel (%p10) target = $region8
  $region5: #{neural_vae_forward.1} parent=0 // loop_body
    %s14 = ssub.s32 %s9, 1
    %s15 = ssub.s32 %s9, 2
    %s16 = sadd.s32 %s9, 1
    %s17 = ssub.s32 %s9, %s16
    %p18 = scmp.eq.s32.totalorder %s17, 0
    %s20 = sadd.s32 %s19, 1
    %s21 = scalar_select %p18, %s19, %s20
    %p24 = pneg %p18
    %p25 = scmp.eq.s32.totalorder %s9, 1
    %p26 = por %p24, %p25
    %p27 = scmp.ne.s32.totalorder %s19, %s22
    %p28 = scmp.eq.s32.totalorder %s9, 0
    %p29 = por %p27, %p28
    %p30 = scmp.ne.s32.totalorder %s19, %s22
    %p31 = scmp.eq.s32.totalorder %s14, 1
    %p32 = por %p30, %p31
    %p33 = scmp.ne.s32.totalorder %s22, %s23
    %p34 = scmp.eq.s32.totalorder %s14, 0
    %p35 = por %p33, %p34
    %p36 = scmp.ne.s32.totalorder %s22, %s23
    %p37 = scmp.eq.s32.totalorder %s15, 1
    %p38 = por %p36, %p37
    %p40 = scmp.ne.s32.totalorder %s23, %s39
    %p41 = scmp.eq.s32.totalorder %s15, 0
    %p42 = por %p40, %p41
    %s44 = sadd.s32 %s43, 1
    %p47 = scmp.eq.s32.totalorder %s9, 1
    %p48 = scmp.ne.s32.totalorder %s43, %s45
    %p49 = scmp.eq.s32.totalorder %s9, 0
    %p50 = por %p48, %p49
    %p51 = scmp.ne.s32.totalorder %s43, %s45
    %p52 = scmp.eq.s32.totalorder %s14, 1
    %p53 = por %p51, %p52
    %p54 = scmp.ne.s32.totalorder %s45, %s46
    %p55 = scmp.eq.s32.totalorder %s14, 0
    %p56 = por %p54, %p55
    %p57 = scmp.ne.s32.totalorder %s45, %s46
    %p58 = scmp.eq.s32.totalorder %s15, 1
    %p59 = por %p57, %p58
    %p61 = scmp.ne.s32.totalorder %s46, %s60
    %p62 = scmp.eq.s32.totalorder %s15, 0
    %p63 = por %p61, %p62
    %s65 = sadd.s32 %s64, 1
    %p68 = scmp.eq.s32.totalorder %s9, 1
    %p69 = scmp.ne.s32.totalorder %s64, %s66
    %p70 = scmp.eq.s32.totalorder %s9, 0
    %p71 = por %p69, %p70
    %p72 = scmp.ne.s32.totalorder %s64, %s66
    %p73 = scmp.eq.s32.totalorder %s14, 1
    %p74 = por %p72, %p73
    %p75 = scmp.ne.s32.totalorder %s66, %s67
    %p76 = scmp.eq.s32.totalorder %s14, 0
    %p77 = por %p75, %p76
    %p78 = scmp.ne.s32.totalorder %s66, %s67
    %p79 = scmp.eq.s32.totalorder %s15, 1
    %p80 = por %p78, %p79
    %p82 = scmp.ne.s32.totalorder %s67, %s81
    %p83 = scmp.eq.s32.totalorder %s15, 0
    %p84 = por %p82, %p83
    %s85 = ssub.s32 %s9, %s16
    %p86 = scmp.eq.s32.totalorder %s85, 0
    %s88 = sadd.s32 %s87, 1
    %s89 = scalar_select %p86, %s87, %s88
    %p92 = pneg %p86
    %p93 = scmp.eq.s32.totalorder %s9, 1
    %p94 = por %p92, %p93
    %p95 = scmp.ne.s32.totalorder %s87, %s90
    %p96 = scmp.eq.s32.totalorder %s9, 0
    %p97 = por %p95, %p96
    %p98 = scmp.ne.s32.totalorder %s87, %s90
    %p99 = scmp.eq.s32.totalorder %s14, 1
    %p100 = por %p98, %p99
    %p101 = scmp.ne.s32.totalorder %s90, %s91
    %p102 = scmp.eq.s32.totalorder %s14, 0
    %p103 = por %p101, %p102
    %p104 = scmp.ne.s32.totalorder %s90, %s91
    %p105 = scmp.eq.s32.totalorder %s15, 1
    %p106 = por %p104, %p105
    %p108 = scmp.ne.s32.totalorder %s91, %s107
    %p109 = scmp.eq.s32.totalorder %s15, 0
    %p110 = por %p108, %p109
    %p111 = scmp.le.s32.totalorder 1, %s9
    %p112 = scmp.lt.s32.totalorder %s9, 3
    %p113 = pnand %p111, %p112
    %p114 = pneg %p113
    // Predicated region
    $region9: #{neural_vae_forward.1} parent=5 // pred_check
      _
    $region10: #{neural_vae_forward.1} parent=5 // pred_check_branch
      %116 = sbr.rel (%p113) target = $region12
    $region11: #{neural_vae_forward.1} parent=5 // pred_region
      %s117 = ssub.s32 %s9, 1
      // Predicated region
      $region13: #{neural_vae_forward.1} parent=11 // pred_check
        %p118 = pneg %p56
      $region14: #{neural_vae_forward.1} parent=11 // pred_check_branch
        %120 = sbr.rel (%p118) target = $region16
      $region15: #{neural_vae_forward.1} parent=11 // pred_region
        _
      $region16: #{neural_vae_forward.1} parent=11 // pred_fallthru
        _
      // Predicated region
      $region17: #{neural_vae_forward.1} parent=11 // pred_check
        %p121 = pneg %p77
      $region18: #{neural_vae_forward.1} parent=11 // pred_check_branch
        %123 = sbr.rel (%p121) target = $region20
      $region19: #{neural_vae_forward.1} parent=11 // pred_region
        _
      $region20: #{neural_vae_forward.1} parent=11 // pred_fallthru
        _
    $region12: #{neural_vae_forward.1} parent=5 // pred_fallthru
      _
    %p124 = scmp.lt.s32.totalorder %s9, 2
    // Predicated region
    $region21: #{neural_vae_forward.1} parent=5 // pred_check
      %p125 = pneg %p124
    $region22: #{neural_vae_forward.1} parent=5 // pred_check_branch
      %127 = sbr.rel (%p125) target = $region24
    $region23: #{neural_vae_forward.1} parent=5 // pred_region
      // Predicated region
      $region25: #{neural_vae_forward.1} parent=23 // pred_check
        %p128 = pneg %p29
      $region26: #{neural_vae_forward.1} parent=23 // pred_check_branch
        %130 = sbr.rel (%p128) target = $region28
      $region27: #{neural_vae_forward.1} parent=23 // pred_region
        %s131 = smul.u32 8, %s9
        %p132 = scmp.lt.s32.totalorder %s131, 15
        %s133 = scalar_select %p132, %s131, 15
        %s134 = smul.addr %s133, 8
        %s135 = scalar_lea.vmem %s0, %s134
        %s136 = smul.u32 8, %s9
      $region28: #{neural_vae_forward.1} parent=23 // pred_fallthru
        _
    $region24: #{neural_vae_forward.1} parent=5 // pred_fallthru
      _
    %p137 = scmp.le.s32.totalorder 1, %s9
    %p138 = scmp.lt.s32.totalorder %s9, 3
    %p139 = pnand %p137, %p138
    %p140 = pneg %p139
    // Predicated region
    $region29: #{neural_vae_forward.1} parent=5 // pred_check
      _
    $region30: #{neural_vae_forward.1} parent=5 // pred_check_branch
      %142 = sbr.rel (%p139) target = $region32
    $region31: #{neural_vae_forward.1} parent=5 // pred_region
      %s143 = ssub.s32 %s9, 1
      %s144 = smul.u32 8, %s14
      %p145 = scmp.lt.s32.totalorder %s144, 15
      %s146 = scalar_select %p145, %s144, 15
      %s147 = smul.addr %s146, 8
      %s148 = scalar_lea.vmem %s0, %s147
      %p149 = pneg %p35
      %p150 = pneg %p32
      %p151 = pneg %p56
      %p152 = pneg %p53
      %p153 = pneg %p77
      %p154 = pneg %p74
      %p155 = pneg %p103
      %p156 = pneg %p100
      %s157 = smul.u32 8, %s14
      %p158 = scmp.lt.s32.totalorder %s157, 15
      %s159 = scalar_select %p158, %s157, 15
      %s160 = smul.addr %s159, 8
      %s161 = scalar_lea.vmem %s3, %s160
      %s162 = smul.u32 8, %s14
      %p163 = scmp.lt.s32.totalorder %s162, 15
      %s164 = scalar_select %p163, %s162, 15
      %s165 = smul.addr %s164, 8
      %s166 = scalar_lea.vmem %s0, %s165
      %s167 = smul.u32 8, %s14
      %s168 = smul.u32 8, %s14
      %p169 = scmp.lt.s32.totalorder %s168, 15
      %s170 = scalar_select %p169, %s168, 15
      %s171 = smul.addr %s170, 8
      %s172 = scalar_lea.vmem %s3, %s171
      %s173 = smul.u32 8, %s14
      %v175 = vld [vmem:[%s166] sm:$0xff]
      %v176 = vld [vmem:[%s166 + $0x8] sm:$0xff]
      %v177 = vld [vmem:[%s166 + $0x10] sm:$0xff]
      %v178 = vld [vmem:[%s166 + $0x18] sm:$0xff]
      %v179 = vld [vmem:[%s166 + $0x20] sm:$0xff]
      %v180 = vld [vmem:[%s166 + $0x28] sm:$0xff]
      %v181 = vld [vmem:[%s166 + $0x30] sm:$0xff]
      %v182 = vld [vmem:[%s166 + $0x38] sm:$0xff]
      %v183 = vld [vmem:[%s1] sm:$0xf]
      %v184 = vld [vmem:[%s1 + $0x20] sm:$0xf]
      %v185 = vld [vmem:[%s1 + $0x40] sm:$0xf]
      %v186 = vld [vmem:[%s1 + $0x60] sm:$0xf]
      %v187 = vld [vmem:[%s1 + $0x80] sm:$0xf]
      %v188 = vld [vmem:[%s1 + $0xa0] sm:$0xf]
      %v189 = vld [vmem:[%s1 + $0xc0] sm:$0xf]
      %v190 = vld [vmem:[%s1 + $0xe0] sm:$0xf]
      %v191 = vld [vmem:[%s1 + $0x100] sm:$0xf]
      %v192 = vld [vmem:[%s1 + $0x120] sm:$0xf]
      %v193 = vld [vmem:[%s1 + $0x140] sm:$0xf]
      %v194 = vld [vmem:[%s1 + $0x160] sm:$0xf]
      %v195 = vld [vmem:[%s1 + $0x180] sm:$0xf]
      %v196 = vld [vmem:[%s1 + $0x1a0] sm:$0xf]
      %v197 = vld [vmem:[%s1 + $0x1c0] sm:$0xf]
      %v198 = vld [vmem:[%s1 + $0x1e0] sm:$0xf]
      %v199 = vld [vmem:[%s2] sm:$0x1]
      %v200 = vpack.c.bf16 %v176, %v175
      %v201 = vpack.c.bf16 %v178, %v177
      %v202 = vpack.c.bf16 %v180, %v179
      %v203 = vpack.c.bf16 %v182, %v181
      %v205 = vlaneseq
      %v206 = vshrl.u32 %v205, 7
      %v207 = vsub.s32 0, %v206
      %v208 = vrot.slane %v199, %v207
      %v226 = vunpack.c.l.b16 %v183
      %v227 = vunpack.c.l.b16 %v184
      %v228 = vunpack.c.l.b16 %v185
      %v229 = vunpack.c.l.b16 %v186
      %v230 = vunpack.c.l.b16 %v187
      %v231 = vunpack.c.l.b16 %v188
      %v232 = vunpack.c.l.b16 %v189
      %v233 = vunpack.c.l.b16 %v190
      %v234 = vunpack.c.l.b16 %v191
      %v235 = vunpack.c.l.b16 %v192
      %v236 = vunpack.c.l.b16 %v193
      %v237 = vunpack.c.l.b16 %v194
      %v238 = vunpack.c.l.b16 %v195
      %v239 = vunpack.c.l.b16 %v196
      %v240 = vunpack.c.l.b16 %v197
      %v241 = vunpack.c.l.b16 %v198
      %v242 = vpack.c.b16 %v227, %v226
      %v243 = vpack.c.b16 %v229, %v228
      %v244 = vpack.c.b16 %v231, %v230
      %v245 = vpack.c.b16 %v233, %v232
      %v246 = vpack.c.b16 %v235, %v234
      %v247 = vpack.c.b16 %v237, %v236
      %v248 = vpack.c.b16 %v239, %v238
      %v249 = vpack.c.b16 %v241, %v240
      %258 = vmatprep.subr.bf16.mxu0 0
      %259 = vmatpush1.bf16.msra.mxu0 %v242
      %260 = vmatprep.subr.bf16.mxu0 0
      %261 = vmatpush1.bf16.msra.mxu0 %v243
      %262 = vmatprep.subr.bf16.mxu0 0
      %263 = vmatpush1.bf16.msra.mxu0 %v244
      %264 = vmatprep.subr.bf16.mxu0 0
      %265 = vmatpush1.bf16.msra.mxu0 %v245
      %266 = vmatprep.subr.bf16.mxu0 0
      %267 = vmatpush1.bf16.msra.mxu0 %v246
      %268 = vmatprep.subr.bf16.mxu0 0
      %269 = vmatpush1.bf16.msra.mxu0 %v247
      %270 = vmatprep.subr.bf16.mxu0 0
      %271 = vmatpush1.bf16.msra.mxu0 %v248
      %272 = vmatprep.subr.bf16.mxu0 0
      %273 = vmatpush1.bf16.msra.mxu0 %v249
      %274 = vmatprep.subr.bf16.mxu0 0
      %275 = vmatpush1.bf16.msra.mxu0 0
      %276 = vmatprep.subr.bf16.mxu0 0
      %277 = vmatpush1.bf16.msra.mxu0 0
      %278 = vmatprep.subr.bf16.mxu0 0
      %279 = vmatpush1.bf16.msra.mxu0 0
      %280 = vmatprep.subr.bf16.mxu0 0
      %281 = vmatpush1.bf16.msra.mxu0 0
      %282 = vmatprep.subr.bf16.mxu0 0
      %283 = vmatpush1.bf16.msra.mxu0 0
      %284 = vmatprep.subr.bf16.mxu0 0
      %285 = vmatpush1.bf16.msra.mxu0 0
      %286 = vmatprep.subr.bf16.mxu0 0
      %287 = vmatpush1.bf16.msra.mxu0 0
      %288 = vmatprep.subr.bf16.mxu0 0
      %289 = vmatpush1.bf16.msra.mxu0 0
      %290 = vmatprep.mubr.bf16.mxu0 0
      %291 = vmatmul.mubr.bf16.gmra.mrb[0].mxu0 %v200
      %v292 = vpop.f32.mrb[0].mxu0
      %v293 = vadd.f32 %v208, %v292
      %v294 = vpop.f32.mrb[0].mxu0
      %v295 = vpop.f32.mrb[0].mxu0
      %v296 = vadd.f32 %v208, %v295
      %v297 = vpop.f32.mrb[0].mxu0
      %298 = vmatprep.mubr.bf16.mxu0 0
      %299 = vmatmul.mubr.bf16.gmra.mrb[0].mxu0 %v201
      %v300 = vpop.f32.mrb[0].mxu0
      %v301 = vadd.f32 %v208, %v300
      %v302 = vpop.f32.mrb[0].mxu0
      %v303 = vpop.f32.mrb[0].mxu0
      %v304 = vadd.f32 %v208, %v303
      %v305 = vpop.f32.mrb[0].mxu0
      %306 = vmatprep.mubr.bf16.mxu0 0
      %307 = vmatmul.mubr.bf16.gmra.mrb[0].mxu0 %v202
      %v308 = vpop.f32.mrb[0].mxu0
      %v309 = vadd.f32 %v208, %v308
      %v310 = vpop.f32.mrb[0].mxu0
      %v311 = vpop.f32.mrb[0].mxu0
      %v312 = vadd.f32 %v208, %v311
      %v313 = vpop.f32.mrb[0].mxu0
      %314 = vmatprep.mubr.bf16.mxu0 0
      %315 = vmatmul.mubr.bf16.gmra.mrb[0].mxu0 %v203
      %v316 = vpop.f32.mrb[0].mxu0
      %v317 = vadd.f32 %v208, %v316
      %v318 = vpop.f32.mrb[0].mxu0
      %v319 = vpop.f32.mrb[0].mxu0
      %v320 = vadd.f32 %v208, %v319
      %v321 = vpop.f32.mrb[0].mxu0
      %322 = vdwg.mxu0
      %v323 = vmul.f32 %v293, 4.5
      %v324 = vmul.f32 %v296, 4.5
      %v325 = vmul.f32 %v301, 4.5
      %v326 = vmul.f32 %v304, 4.5
      %v327 = vmul.f32 %v309, 4.5
      %v328 = vmul.f32 %v312, 4.5
      %v329 = vmul.f32 %v317, 4.5
      %v330 = vmul.f32 %v320, 4.5
      %v331 = vmin.f32 %v323, 20.0
      %v332 = vmin.f32 %v324, 20.0
      %v333 = vmin.f32 %v325, 20.0
      %v334 = vmin.f32 %v326, 20.0
      %v335 = vmin.f32 %v327, 20.0
      %v336 = vmin.f32 %v328, 20.0
      %v337 = vmin.f32 %v329, 20.0
      %v338 = vmin.f32 %v330, 20.0
      %vm339 = vcmp.gt.f32.partialorder %v323, 20.0
      %vm340 = vcmp.gt.f32.partialorder %v324, 20.0
      %vm341 = vcmp.gt.f32.partialorder %v325, 20.0
      %vm342 = vcmp.gt.f32.partialorder %v326, 20.0
      %vm343 = vcmp.gt.f32.partialorder %v327, 20.0
      %vm344 = vcmp.gt.f32.partialorder %v328, 20.0
      %vm345 = vcmp.gt.f32.partialorder %v329, 20.0
      %vm346 = vcmp.gt.f32.partialorder %v330, 20.0
      %v347 = vmul.f32 %v331, 1.442695
      %v348 = vpow.pop %v347
      %v349 = vmul.f32 %v332, 1.442695
      %v350 = vpow.pop %v349
      %v351 = vmul.f32 %v333, 1.442695
      %v352 = vpow.pop %v351
      %v353 = vmul.f32 %v334, 1.442695
      %v354 = vpow.pop %v353
      %v355 = vmul.f32 %v335, 1.442695
      %v356 = vpow.pop %v355
      %v357 = vmul.f32 %v336, 1.442695
      %v358 = vpow.pop %v357
      %v359 = vmul.f32 %v337, 1.442695
      %v360 = vpow.pop %v359
      %v361 = vmul.f32 %v338, 1.442695
      %v362 = vpow.pop %v361
      %v363 = vadd.f32 %v348, 1.0
      %v364 = vlog2.pop %v363
      %v365 = vmul.f32 %v364, 0.6931472
      %v366 = vmul.f32 -0.5, %v348
      %v367 = vadd.f32 %v366, 1.0
      %v368 = vmul.f32 %v367, %v348
      %v369 = vand.u32 2147483647, %v348
      %vm370 = vcmp.lt.f32.partialorder %v369, 0.0004427343
      %v371 = vsel %vm370, %v368, %v365
      %v372 = vadd.f32 %v350, 1.0
      %v373 = vlog2.pop %v372
      %v374 = vmul.f32 %v373, 0.6931472
      %v375 = vmul.f32 -0.5, %v350
      %v376 = vadd.f32 %v375, 1.0
      %v377 = vmul.f32 %v376, %v350
      %v378 = vand.u32 2147483647, %v350
      %vm379 = vcmp.lt.f32.partialorder %v378, 0.0004427343
      %v380 = vsel %vm379, %v377, %v374
      %v381 = vadd.f32 %v352, 1.0
      %v382 = vlog2.pop %v381
      %v383 = vmul.f32 %v382, 0.6931472
      %v384 = vmul.f32 -0.5, %v352
      %v385 = vadd.f32 %v384, 1.0
      %v386 = vmul.f32 %v385, %v352
      %v387 = vand.u32 2147483647, %v352
      %vm388 = vcmp.lt.f32.partialorder %v387, 0.0004427343
      %v389 = vsel %vm388, %v386, %v383
      %v390 = vadd.f32 %v354, 1.0
      %v391 = vlog2.pop %v390
      %v392 = vmul.f32 %v391, 0.6931472
      %v393 = vmul.f32 -0.5, %v354
      %v394 = vadd.f32 %v393, 1.0
      %v395 = vmul.f32 %v394, %v354
      %v396 = vand.u32 2147483647, %v354
      %vm397 = vcmp.lt.f32.partialorder %v396, 0.0004427343
      %v398 = vsel %vm397, %v395, %v392
      %v399 = vadd.f32 %v356, 1.0
      %v400 = vlog2.pop %v399
      %v401 = vmul.f32 %v400, 0.6931472
      %v402 = vmul.f32 -0.5, %v356
      %v403 = vadd.f32 %v402, 1.0
      %v404 = vmul.f32 %v403, %v356
      %v405 = vand.u32 2147483647, %v356
      %vm406 = vcmp.lt.f32.partialorder %v405, 0.0004427343
      %v407 = vsel %vm406, %v404, %v401
      %v408 = vadd.f32 %v358, 1.0
      %v409 = vlog2.pop %v408
      %v410 = vmul.f32 %v409, 0.6931472
      %v411 = vmul.f32 -0.5, %v358
      %v412 = vadd.f32 %v411, 1.0
      %v413 = vmul.f32 %v412, %v358
      %v414 = vand.u32 2147483647, %v358
      %vm415 = vcmp.lt.f32.partialorder %v414, 0.0004427343
      %v416 = vsel %vm415, %v413, %v410
      %v417 = vadd.f32 %v360, 1.0
      %v418 = vlog2.pop %v417
      %v419 = vmul.f32 %v418, 0.6931472
      %v420 = vmul.f32 -0.5, %v360
      %v421 = vadd.f32 %v420, 1.0
      %v422 = vmul.f32 %v421, %v360
      %v423 = vand.u32 2147483647, %v360
      %vm424 = vcmp.lt.f32.partialorder %v423, 0.0004427343
      %v425 = vsel %vm424, %v422, %v419
      %v426 = vadd.f32 %v362, 1.0
      %v427 = vlog2.pop %v426
      %v428 = vmul.f32 %v427, 0.6931472
      %v429 = vmul.f32 -0.5, %v362
      %v430 = vadd.f32 %v429, 1.0
      %v431 = vmul.f32 %v430, %v362
      %v432 = vand.u32 2147483647, %v362
      %vm433 = vcmp.lt.f32.partialorder %v432, 0.0004427343
      %v434 = vsel %vm433, %v431, %v428
      %v435 = vrcp.pop 4.5
      %v436 = vmul.f32 %v371, %v435
      %v437 = vmul.f32 %v380, %v435
      %v438 = vmul.f32 %v389, %v435
      %v439 = vmul.f32 %v398, %v435
      %v440 = vmul.f32 %v407, %v435
      %v441 = vmul.f32 %v416, %v435
      %v442 = vmul.f32 %v425, %v435
      %v443 = vmul.f32 %v434, %v435
      %v444 = vsel %vm339, %v293, %v436
      %v445 = vsel %vm340, %v296, %v437
      %v446 = vsel %vm341, %v301, %v438
      %v447 = vsel %vm342, %v304, %v439
      %v448 = vsel %vm343, %v309, %v440
      %v449 = vsel %vm344, %v312, %v441
      %v450 = vsel %vm345, %v317, %v442
      %v451 = vsel %vm346, %v320, %v443
      %v452 = vld [vmem:[%s1 + $0x4] sm:$0xf]
      %v453 = vld [vmem:[%s1 + $0x24] sm:$0xf]
      %v454 = vld [vmem:[%s1 + $0x44] sm:$0xf]
      %v455 = vld [vmem:[%s1 + $0x64] sm:$0xf]
      %v456 = vld [vmem:[%s1 + $0x84] sm:$0xf]
      %v457 = vld [vmem:[%s1 + $0xa4] sm:$0xf]
      %v458 = vld [vmem:[%s1 + $0xc4] sm:$0xf]
      %v459 = vld [vmem:[%s1 + $0xe4] sm:$0xf]
      %v460 = vld [vmem:[%s1 + $0x104] sm:$0xf]
      %v461 = vld [vmem:[%s1 + $0x124] sm:$0xf]
      %v462 = vld [vmem:[%s1 + $0x144] sm:$0xf]
      %v463 = vld [vmem:[%s1 + $0x164] sm:$0xf]
      %v464 = vld [vmem:[%s1 + $0x184] sm:$0xf]
      %v465 = vld [vmem:[%s1 + $0x1a4] sm:$0xf]
      %v466 = vld [vmem:[%s1 + $0x1c4] sm:$0xf]
      %v467 = vld [vmem:[%s1 + $0x1e4] sm:$0xf]
      %v468 = vld [vmem:[%s2 + $0x1] sm:$0x1]
      %v469 = vpack.c.bf16 %v445, %v444
      %v470 = vpack.c.bf16 %v447, %v446
      %v471 = vpack.c.bf16 %v449, %v448
      %v472 = vpack.c.bf16 %v451, %v450
      %v474 = vlaneseq
      %v475 = vshrl.u32 %v474, 7
      %v476 = vsub.s32 0, %v475
      %v477 = vrot.slane %v468, %v476
      %v495 = vunpack.c.l.b16 %v452
      %v496 = vunpack.c.l.b16 %v453
      %v497 = vunpack.c.l.b16 %v454
      %v498 = vunpack.c.l.b16 %v455
      %v499 = vunpack.c.l.b16 %v456
      %v500 = vunpack.c.l.b16 %v457
      %v501 = vunpack.c.l.b16 %v458
      %v502 = vunpack.c.l.b16 %v459
      %v503 = vunpack.c.l.b16 %v460
      %v504 = vunpack.c.l.b16 %v461
      %v505 = vunpack.c.l.b16 %v462
      %v506 = vunpack.c.l.b16 %v463
      %v507 = vunpack.c.l.b16 %v464
      %v508 = vunpack.c.l.b16 %v465
      %v509 = vunpack.c.l.b16 %v466
      %v510 = vunpack.c.l.b16 %v467
      %v511 = vpack.c.b16 %v496, %v495
      %v512 = vpack.c.b16 %v498, %v497
      %v513 = vpack.c.b16 %v500, %v499
      %v514 = vpack.c.b16 %v502, %v501
      %v515 = vpack.c.b16 %v504, %v503
      %v516 = vpack.c.b16 %v506, %v505
      %v517 = vpack.c.b16 %v508, %v507
      %v518 = vpack.c.b16 %v510, %v509
      %527 = vmatprep.subr.bf16.mxu0 0
      %528 = vmatpush1.bf16.msra.mxu0 %v511
      %529 = vmatprep.subr.bf16.mxu0 0
      %530 = vmatpush1.bf16.msra.mxu0 %v512
      %531 = vmatprep.subr.bf16.mxu0 0
      %532 = vmatpush1.bf16.msra.mxu0 %v513
      %533 = vmatprep.subr.bf16.mxu0 0
      %534 = vmatpush1.bf16.msra.mxu0 %v514
      %535 = vmatprep.subr.bf16.mxu0 0
      %536 = vmatpush1.bf16.msra.mxu0 %v515
      %537 = vmatprep.subr.bf16.mxu0 0
      %538 = vmatpush1.bf16.msra.mxu0 %v516
      %539 = vmatprep.subr.bf16.mxu0 0
      %540 = vmatpush1.bf16.msra.mxu0 %v517
      %541 = vmatprep.subr.bf16.mxu0 0
      %542 = vmatpush1.bf16.msra.mxu0 %v518
      %543 = vmatprep.subr.bf16.mxu0 0
      %544 = vmatpush1.bf16.msra.mxu0 0
      %545 = vmatprep.subr.bf16.mxu0 0
      %546 = vmatpush1.bf16.msra.mxu0 0
      %547 = vmatprep.subr.bf16.mxu0 0
      %548 = vmatpush1.bf16.msra.mxu0 0
      %549 = vmatprep.subr.bf16.mxu0 0
      %550 = vmatpush1.bf16.msra.mxu0 0
      %551 = vmatprep.subr.bf16.mxu0 0
      %552 = vmatpush1.bf16.msra.mxu0 0
      %553 = vmatprep.subr.bf16.mxu0 0
      %554 = vmatpush1.bf16.msra.mxu0 0
      %555 = vmatprep.subr.bf16.mxu0 0
      %556 = vmatpush1.bf16.msra.mxu0 0
      %557 = vmatprep.subr.bf16.mxu0 0
      %558 = vmatpush1.bf16.msra.mxu0 0
      %559 = vmatprep.mubr.bf16.mxu0 0
      %560 = vmatmul.mubr.bf16.gmra.mrb[0].mxu0 %v469
      %v561 = vpop.f32.mrb[0].mxu0
      %v562 = vadd.f32 %v477, %v561
      %v563 = vpop.f32.mrb[0].mxu0
      %v564 = vpop.f32.mrb[0].mxu0
      %v565 = vadd.f32 %v477, %v564
      %v566 = vpop.f32.mrb[0].mxu0
      %567 = vmatprep.mubr.bf16.mxu0 0
      %568 = vmatmul.mubr.bf16.gmra.mrb[0].mxu0 %v470
      %v569 = vpop.f32.mrb[0].mxu0
      %v570 = vadd.f32 %v477, %v569
      %v571 = vpop.f32.mrb[0].mxu0
      %v572 = vpop.f32.mrb[0].mxu0
      %v573 = vadd.f32 %v477, %v572
      %v574 = vpop.f32.mrb[0].mxu0
      %575 = vmatprep.mubr.bf16.mxu0 0
      %576 = vmatmul.mubr.bf16.gmra.mrb[0].mxu0 %v471
      %v577 = vpop.f32.mrb[0].mxu0
      %v578 = vadd.f32 %v477, %v577
      %v579 = vpop.f32.mrb[0].mxu0
      %v580 = vpop.f32.mrb[0].mxu0
      %v581 = vadd.f32 %v477, %v580
      %v582 = vpop.f32.mrb[0].mxu0
      %583 = vmatprep.mubr.bf16.mxu0 0
      %584 = vmatmul.mubr.bf16.gmra.mrb[0].mxu0 %v472
      %v585 = vpop.f32.mrb[0].mxu0
      %v586 = vadd.f32 %v477, %v585
      %v587 = vpop.f32.mrb[0].mxu0
      %v588 = vpop.f32.mrb[0].mxu0
      %v589 = vadd.f32 %v477, %v588
      %v590 = vpop.f32.mrb[0].mxu0
      %591 = vdwg.mxu0
      %v592 = vmul.f32 %v562, 4.5
      %v593 = vmul.f32 %v565, 4.5
      %v594 = vmul.f32 %v570, 4.5
      %v595 = vmul.f32 %v573, 4.5
      %v596 = vmul.f32 %v578, 4.5
      %v597 = vmul.f32 %v581, 4.5
      %v598 = vmul.f32 %v586, 4.5
      %v599 = vmul.f32 %v589, 4.5
      %v600 = vmin.f32 %v592, 20.0
      %v601 = vmin.f32 %v593, 20.0
      %v602 = vmin.f32 %v594, 20.0
      %v603 = vmin.f32 %v595, 20.0
      %v604 = vmin.f32 %v596, 20.0
      %v605 = vmin.f32 %v597, 20.0
      %v606 = vmin.f32 %v598, 20.0
      %v607 = vmin.f32 %v599, 20.0
      %vm608 = vcmp.gt.f32.partialorder %v592, 20.0
      %vm609 = vcmp.gt.f32.partialorder %v593, 20.0
      %vm610 = vcmp.gt.f32.partialorder %v594, 20.0
      %vm611 = vcmp.gt.f32.partialorder %v595, 20.0
      %vm612 = vcmp.gt.f32.partialorder %v596, 20.0
      %vm613 = vcmp.gt.f32.partialorder %v597, 20.0
      %vm614 = vcmp.gt.f32.partialorder %v598, 20.0
      %vm615 = vcmp.gt.f32.partialorder %v599, 20.0
      %v616 = vmul.f32 %v600, 1.442695
      %v617 = vpow.pop %v616
      %v618 = vmul.f32 %v601, 1.442695
      %v619 = vpow.pop %v618
      %v620 = vmul.f32 %v602, 1.442695
      %v621 = vpow.pop %v620
      %v622 = vmul.f32 %v603, 1.442695
      %v623 = vpow.pop %v622
      %v624 = vmul.f32 %v604, 1.442695
      %v625 = vpow.pop %v624
      %v626 = vmul.f32 %v605, 1.442695
      %v627 = vpow.pop %v626
      %v628 = vmul.f32 %v606, 1.442695
      %v629 = vpow.pop %v628
      %v630 = vmul.f32 %v607, 1.442695
      %v631 = vpow.pop %v630
      %v632 = vadd.f32 %v617, 1.0
      %v633 = vlog2.pop %v632
      %v634 = vmul.f32 %v633, 0.6931472
      %v635 = vmul.f32 -0.5, %v617
      %v636 = vadd.f32 %v635, 1.0
      %v637 = vmul.f32 %v636, %v617
      %v638 = vand.u32 2147483647, %v617
      %vm639 = vcmp.lt.f32.partialorder %v638, 0.0004427343
      %v640 = vsel %vm639, %v637, %v634
      %v641 = vadd.f32 %v619, 1.0
      %v642 = vlog2.pop %v641
      %v643 = vmul.f32 %v642, 0.6931472
      %v644 = vmul.f32 -0.5, %v619
      %v645 = vadd.f32 %v644, 1.0
      %v646 = vmul.f32 %v645, %v619
      %v647 = vand.u32 2147483647, %v619
      %vm648 = vcmp.lt.f32.partialorder %v647, 0.0004427343
      %v649 = vsel %vm648, %v646, %v643
      %v650 = vadd.f32 %v621, 1.0
      %v651 = vlog2.pop %v650
      %v652 = vmul.f32 %v651, 0.6931472
      %v653 = vmul.f32 -0.5, %v621
      %v654 = vadd.f32 %v653, 1.0
      %v655 = vmul.f32 %v654, %v621
      %v656 = vand.u32 2147483647, %v621
      %vm657 = vcmp.lt.f32.partialorder %v656, 0.0004427343
      %v658 = vsel %vm657, %v655, %v652
      %v659 = vadd.f32 %v623, 1.0
      %v660 = vlog2.pop %v659
      %v661 = vmul.f32 %v660, 0.6931472
      %v662 = vmul.f32 -0.5, %v623
      %v663 = vadd.f32 %v662, 1.0
      %v664 = vmul.f32 %v663, %v623
      %v665 = vand.u32 2147483647, %v623
      %vm666 = vcmp.lt.f32.partialorder %v665, 0.0004427343
      %v667 = vsel %vm666, %v664, %v661
      %v668 = vadd.f32 %v625, 1.0
      %v669 = vlog2.pop %v668
      %v670 = vmul.f32 %v669, 0.6931472
      %v671 = vmul.f32 -0.5, %v625
      %v672 = vadd.f32 %v671, 1.0
      %v673 = vmul.f32 %v672, %v625
      %v674 = vand.u32 2147483647, %v625
      %vm675 = vcmp.lt.f32.partialorder %v674, 0.0004427343
      %v676 = vsel %vm675, %v673, %v670
      %v677 = vadd.f32 %v627, 1.0
      %v678 = vlog2.pop %v677
      %v679 = vmul.f32 %v678, 0.6931472
      %v680 = vmul.f32 -0.5, %v627
      %v681 = vadd.f32 %v680, 1.0
      %v682 = vmul.f32 %v681, %v627
      %v683 = vand.u32 2147483647, %v627
      %vm684 = vcmp.lt.f32.partialorder %v683, 0.0004427343
      %v685 = vsel %vm684, %v682, %v679
      %v686 = vadd.f32 %v629, 1.0
      %v687 = vlog2.pop %v686
      %v688 = vmul.f32 %v687, 0.6931472
      %v689 = vmul.f32 -0.5, %v629
      %v690 = vadd.f32 %v689, 1.0
      %v691 = vmul.f32 %v690, %v629
      %v692 = vand.u32 2147483647, %v629
      %vm693 = vcmp.lt.f32.partialorder %v692, 0.0004427343
      %v694 = vsel %vm693, %v691, %v688
      %v695 = vadd.f32 %v631, 1.0
      %v696 = vlog2.pop %v695
      %v697 = vmul.f32 %v696, 0.6931472
      %v698 = vmul.f32 -0.5, %v631
      %v699 = vadd.f32 %v698, 1.0
      %v700 = vmul.f32 %v699, %v631
      %v701 = vand.u32 2147483647, %v631
      %vm702 = vcmp.lt.f32.partialorder %v701, 0.0004427343
      %v703 = vsel %vm702, %v700, %v697
      %v704 = vmul.f32 %v640, %v435
      %v705 = vmul.f32 %v649, %v435
      %v706 = vmul.f32 %v658, %v435
      %v707 = vmul.f32 %v667, %v435
      %v708 = vmul.f32 %v676, %v435
      %v709 = vmul.f32 %v685, %v435
      %v710 = vmul.f32 %v694, %v435
      %v711 = vmul.f32 %v703, %v435
      %v712 = vsel %vm608, %v562, %v704
      %v713 = vsel %vm609, %v565, %v705
      %v714 = vsel %vm610, %v570, %v706
      %v715 = vsel %vm611, %v573, %v707
      %v716 = vsel %vm612, %v578, %v708
      %v717 = vsel %vm613, %v581, %v709
      %v718 = vsel %vm614, %v586, %v710
      %v719 = vsel %vm615, %v589, %v711
      %v720 = vld [vmem:[%s1 + $0x8] sm:$0xf]
      %v721 = vld [vmem:[%s1 + $0x28] sm:$0xf]
      %v722 = vld [vmem:[%s1 + $0x48] sm:$0xf]
      %v723 = vld [vmem:[%s1 + $0x68] sm:$0xf]
      %v724 = vld [vmem:[%s1 + $0x88] sm:$0xf]
      %v725 = vld [vmem:[%s1 + $0xa8] sm:$0xf]
      %v726 = vld [vmem:[%s1 + $0xc8] sm:$0xf]
      %v727 = vld [vmem:[%s1 + $0xe8] sm:$0xf]
      %v728 = vld [vmem:[%s1 + $0x108] sm:$0xf]
      %v729 = vld [vmem:[%s1 + $0x128] sm:$0xf]
      %v730 = vld [vmem:[%s1 + $0x148] sm:$0xf]
      %v731 = vld [vmem:[%s1 + $0x168] sm:$0xf]
      %v732 = vld [vmem:[%s1 + $0x188] sm:$0xf]
      %v733 = vld [vmem:[%s1 + $0x1a8] sm:$0xf]
      %v734 = vld [vmem:[%s1 + $0x1c8] sm:$0xf]
      %v735 = vld [vmem:[%s1 + $0x1e8] sm:$0xf]
      %v736 = vld [vmem:[%s2 + $0x2] sm:$0x1]
      %v737 = vpack.c.bf16 %v713, %v712
      %v738 = vpack.c.bf16 %v715, %v714
      %v739 = vpack.c.bf16 %v717, %v716
      %v740 = vpack.c.bf16 %v719, %v718
      %v742 = vlaneseq
      %v743 = vshrl.u32 %v742, 7
      %v744 = vsub.s32 0, %v743
      %v745 = vrot.slane %v736, %v744
      %v763 = vunpack.c.l.b16 %v720
      %v764 = vunpack.c.l.b16 %v721
      %v765 = vunpack.c.l.b16 %v722
      %v766 = vunpack.c.l.b16 %v723
      %v767 = vunpack.c.l.b16 %v724
      %v768 = vunpack.c.l.b16 %v725
      %v769 = vunpack.c.l.b16 %v726
      %v770 = vunpack.c.l.b16 %v727
      %v771 = vunpack.c.l.b16 %v728
      %v772 = vunpack.c.l.b16 %v729
      %v773 = vunpack.c.l.b16 %v730
      %v774 = vunpack.c.l.b16 %v731
      %v775 = vunpack.c.l.b16 %v732
      %v776 = vunpack.c.l.b16 %v733
      %v777 = vunpack.c.l.b16 %v734
      %v778 = vunpack.c.l.b16 %v735
      %v779 = vpack.c.b16 %v764, %v763
      %v780 = vpack.c.b16 %v766, %v765
      %v781 = vpack.c.b16 %v768, %v767
      %v782 = vpack.c.b16 %v770, %v769
      %v783 = vpack.c.b16 %v772, %v771
      %v784 = vpack.c.b16 %v774, %v773
      %v785 = vpack.c.b16 %v776, %v775
      %v786 = vpack.c.b16 %v778, %v777
      %795 = vmatprep.subr.bf16.mxu0 0
      %796 = vmatpush1.bf16.msra.mxu0 %v779
      %797 = vmatprep.subr.bf16.mxu0 0
      %798 = vmatpush1.bf16.msra.mxu0 %v780
      %799 = vmatprep.subr.bf16.mxu0 0
      %800 = vmatpush1.bf16.msra.mxu0 %v781
      %801 = vmatprep.subr.bf16.mxu0 0
      %802 = vmatpush1.bf16.msra.mxu0 %v782
      %803 = vmatprep.subr.bf16.mxu0 0
      %804 = vmatpush1.bf16.msra.mxu0 %v783
      %805 = vmatprep.subr.bf16.mxu0 0
      %806 = vmatpush1.bf16.msra.mxu0 %v784
      %807 = vmatprep.subr.bf16.mxu0 0
      %808 = vmatpush1.bf16.msra.mxu0 %v785
      %809 = vmatprep.subr.bf16.mxu0 0
      %810 = vmatpush1.bf16.msra.mxu0 %v786
      %811 = vmatprep.subr.bf16.mxu0 0
      %812 = vmatpush1.bf16.msra.mxu0 0
      %813 = vmatprep.subr.bf16.mxu0 0
      %814 = vmatpush1.bf16.msra.mxu0 0
      %815 = vmatprep.subr.bf16.mxu0 0
      %816 = vmatpush1.bf16.msra.mxu0 0
      %817 = vmatprep.subr.bf16.mxu0 0
      %818 = vmatpush1.bf16.msra.mxu0 0
      %819 = vmatprep.subr.bf16.mxu0 0
      %820 = vmatpush1.bf16.msra.mxu0 0
      %821 = vmatprep.subr.bf16.mxu0 0
      %822 = vmatpush1.bf16.msra.mxu0 0
      %823 = vmatprep.subr.bf16.mxu0 0
      %824 = vmatpush1.bf16.msra.mxu0 0
      %825 = vmatprep.subr.bf16.mxu0 0
      %826 = vmatpush1.bf16.msra.mxu0 0
      %827 = vmatprep.mubr.bf16.mxu0 0
      %828 = vmatmul.mubr.bf16.gmra.mrb[0].mxu0 %v737
      %v829 = vpop.f32.mrb[0].mxu0
      %v830 = vadd.f32 %v745, %v829
      %v831 = vpop.f32.mrb[0].mxu0
      %v832 = vpop.f32.mrb[0].mxu0
      %v833 = vadd.f32 %v745, %v832
      %v834 = vpop.f32.mrb[0].mxu0
      %835 = vmatprep.mubr.bf16.mxu0 0
      %836 = vmatmul.mubr.bf16.gmra.mrb[0].mxu0 %v738
      %v837 = vpop.f32.mrb[0].mxu0
      %v838 = vadd.f32 %v745, %v837
      %v839 = vpop.f32.mrb[0].mxu0
      %v840 = vpop.f32.mrb[0].mxu0
      %v841 = vadd.f32 %v745, %v840
      %v842 = vpop.f32.mrb[0].mxu0
      %843 = vmatprep.mubr.bf16.mxu0 0
      %844 = vmatmul.mubr.bf16.gmra.mrb[0].mxu0 %v739
      %v845 = vpop.f32.mrb[0].mxu0
      %v846 = vadd.f32 %v745, %v845
      %v847 = vpop.f32.mrb[0].mxu0
      %v848 = vpop.f32.mrb[0].mxu0
      %v849 = vadd.f32 %v745, %v848
      %v850 = vpop.f32.mrb[0].mxu0
      %851 = vmatprep.mubr.bf16.mxu0 0
      %852 = vmatmul.mubr.bf16.gmra.mrb[0].mxu0 %v740
      %v853 = vpop.f32.mrb[0].mxu0
      %v854 = vadd.f32 %v745, %v853
      %v855 = vpop.f32.mrb[0].mxu0
      %v856 = vpop.f32.mrb[0].mxu0
      %v857 = vadd.f32 %v745, %v856
      %v858 = vpop.f32.mrb[0].mxu0
      %859 = vdwg.mxu0
      %v860 = vmul.f32 %v830, 4.5
      %v861 = vmul.f32 %v833, 4.5
      %v862 = vmul.f32 %v838, 4.5
      %v863 = vmul.f32 %v841, 4.5
      %v864 = vmul.f32 %v846, 4.5
      %v865 = vmul.f32 %v849, 4.5
      %v866 = vmul.f32 %v854, 4.5
      %v867 = vmul.f32 %v857, 4.5
      %v868 = vmin.f32 %v860, 20.0
      %v869 = vmin.f32 %v861, 20.0
      %v870 = vmin.f32 %v862, 20.0
      %v871 = vmin.f32 %v863, 20.0
      %v872 = vmin.f32 %v864, 20.0
      %v873 = vmin.f32 %v865, 20.0
      %v874 = vmin.f32 %v866, 20.0
      %v875 = vmin.f32 %v867, 20.0
      %vm876 = vcmp.gt.f32.partialorder %v860, 20.0
      %vm877 = vcmp.gt.f32.partialorder %v861, 20.0
      %vm878 = vcmp.gt.f32.partialorder %v862, 20.0
      %vm879 = vcmp.gt.f32.partialorder %v863, 20.0
      %vm880 = vcmp.gt.f32.partialorder %v864, 20.0
      %vm881 = vcmp.gt.f32.partialorder %v865, 20.0
      %vm882 = vcmp.gt.f32.partialorder %v866, 20.0
      %vm883 = vcmp.gt.f32.partialorder %v867, 20.0
      %v884 = vmul.f32 %v868, 1.442695
      %v885 = vpow.pop %v884
      %v886 = vmul.f32 %v869, 1.442695
      %v887 = vpow.pop %v886
      %v888 = vmul.f32 %v870, 1.442695
      %v889 = vpow.pop %v888
      %v890 = vmul.f32 %v871, 1.442695
      %v891 = vpow.pop %v890
      %v892 = vmul.f32 %v872, 1.442695
      %v893 = vpow.pop %v892
      %v894 = vmul.f32 %v873, 1.442695
      %v895 = vpow.pop %v894
      %v896 = vmul.f32 %v874, 1.442695
      %v897 = vpow.pop %v896
      %v898 = vmul.f32 %v875, 1.442695
      %v899 = vpow.pop %v898
      %v900 = vadd.f32 %v885, 1.0
      %v901 = vlog2.pop %v900
      %v902 = vmul.f32 %v901, 0.6931472
      %v903 = vmul.f32 -0.5, %v885
      %v904 = vadd.f32 %v903, 1.0
      %v905 = vmul.f32 %v904, %v885
      %v906 = vand.u32 2147483647, %v885
      %vm907 = vcmp.lt.f32.partialorder %v906, 0.0004427343
      %v908 = vsel %vm907, %v905, %v902
      %v909 = vadd.f32 %v887, 1.0
      %v910 = vlog2.pop %v909
      %v911 = vmul.f32 %v910, 0.6931472
      %v912 = vmul.f32 -0.5, %v887
      %v913 = vadd.f32 %v912, 1.0
      %v914 = vmul.f32 %v913, %v887
      %v915 = vand.u32 2147483647, %v887
      %vm916 = vcmp.lt.f32.partialorder %v915, 0.0004427343
      %v917 = vsel %vm916, %v914, %v911
      %v918 = vadd.f32 %v889, 1.0
      %v919 = vlog2.pop %v918
      %v920 = vmul.f32 %v919, 0.6931472
      %v921 = vmul.f32 -0.5, %v889
      %v922 = vadd.f32 %v921, 1.0
      %v923 = vmul.f32 %v922, %v889
      %v924 = vand.u32 2147483647, %v889
      %vm925 = vcmp.lt.f32.partialorder %v924, 0.0004427343
      %v926 = vsel %vm925, %v923, %v920
      %v927 = vadd.f32 %v891, 1.0
      %v928 = vlog2.pop %v927
      %v929 = vmul.f32 %v928, 0.6931472
      %v930 = vmul.f32 -0.5, %v891
      %v931 = vadd.f32 %v930, 1.0
      %v932 = vmul.f32 %v931, %v891
      %v933 = vand.u32 2147483647, %v891
      %vm934 = vcmp.lt.f32.partialorder %v933, 0.0004427343
      %v935 = vsel %vm934, %v932, %v929
      %v936 = vadd.f32 %v893, 1.0
      %v937 = vlog2.pop %v936
      %v938 = vmul.f32 %v937, 0.6931472
      %v939 = vmul.f32 -0.5, %v893
      %v940 = vadd.f32 %v939, 1.0
      %v941 = vmul.f32 %v940, %v893
      %v942 = vand.u32 2147483647, %v893
      %vm943 = vcmp.lt.f32.partialorder %v942, 0.0004427343
      %v944 = vsel %vm943, %v941, %v938
      %v945 = vadd.f32 %v895, 1.0
      %v946 = vlog2.pop %v945
      %v947 = vmul.f32 %v946, 0.6931472
      %v948 = vmul.f32 -0.5, %v895
      %v949 = vadd.f32 %v948, 1.0
      %v950 = vmul.f32 %v949, %v895
      %v951 = vand.u32 2147483647, %v895
      %vm952 = vcmp.lt.f32.partialorder %v951, 0.0004427343
      %v953 = vsel %vm952, %v950, %v947
      %v954 = vadd.f32 %v897, 1.0
      %v955 = vlog2.pop %v954
      %v956 = vmul.f32 %v955, 0.6931472
      %v957 = vmul.f32 -0.5, %v897
      %v958 = vadd.f32 %v957, 1.0
      %v959 = vmul.f32 %v958, %v897
      %v960 = vand.u32 2147483647, %v897
      %vm961 = vcmp.lt.f32.partialorder %v960, 0.0004427343
      %v962 = vsel %vm961, %v959, %v956
      %v963 = vadd.f32 %v899, 1.0
      %v964 = vlog2.pop %v963
      %v965 = vmul.f32 %v964, 0.6931472
      %v966 = vmul.f32 -0.5, %v899
      %v967 = vadd.f32 %v966, 1.0
      %v968 = vmul.f32 %v967, %v899
      %v969 = vand.u32 2147483647, %v899
      %vm970 = vcmp.lt.f32.partialorder %v969, 0.0004427343
      %v971 = vsel %vm970, %v968, %v965
      %v972 = vmul.f32 %v908, %v435
      %v973 = vmul.f32 %v917, %v435
      %v974 = vmul.f32 %v926, %v435
      %v975 = vmul.f32 %v935, %v435
      %v976 = vmul.f32 %v944, %v435
      %v977 = vmul.f32 %v953, %v435
      %v978 = vmul.f32 %v962, %v435
      %v979 = vmul.f32 %v971, %v435
      %v980 = vsel %vm876, %v830, %v972
      %v981 = vsel %vm877, %v833, %v973
      %v982 = vsel %vm878, %v838, %v974
      %v983 = vsel %vm879, %v841, %v975
      %v984 = vsel %vm880, %v846, %v976
      %v985 = vsel %vm881, %v849, %v977
      %v986 = vsel %vm882, %v854, %v978
      %v987 = vsel %vm883, %v857, %v979
      %v988 = vld [vmem:[%s1 + $0xc] sm:$0xf]
      %v989 = vld [vmem:[%s1 + $0x2c] sm:$0xf]
      %v990 = vld [vmem:[%s1 + $0x4c] sm:$0xf]
      %v991 = vld [vmem:[%s1 + $0x6c] sm:$0xf]
      %v992 = vld [vmem:[%s1 + $0x8c] sm:$0xf]
      %v993 = vld [vmem:[%s1 + $0xac] sm:$0xf]
      %v994 = vld [vmem:[%s1 + $0xcc] sm:$0xf]
      %v995 = vld [vmem:[%s1 + $0xec] sm:$0xf]
      %v996 = vld [vmem:[%s1 + $0x10c] sm:$0xf]
      %v997 = vld [vmem:[%s1 + $0x12c] sm:$0xf]
      %v998 = vld [vmem:[%s1 + $0x14c] sm:$0xf]
      %v999 = vld [vmem:[%s1 + $0x16c] sm:$0xf]
      %v1000 = vld [vmem:[%s1 + $0x18c] sm:$0xf]
      %v1001 = vld [vmem:[%s1 + $0x1ac] sm:$0xf]
      %v1002 = vld [vmem:[%s1 + $0x1cc] sm:$0xf]
      %v1003 = vld [vmem:[%s1 + $0x1ec] sm:$0xf]
      %v1004 = vld [vmem:[%s2 + $0x3] sm:$0x1]
      %v1005 = vpack.c.bf16 %v981, %v980
      %v1006 = vpack.c.bf16 %v983, %v982
      %v1007 = vpack.c.bf16 %v985, %v984
      %v1008 = vpack.c.bf16 %v987, %v986
      %v1010 = vlaneseq
      %v1011 = vshrl.u32 %v1010, 7
      %v1012 = vsub.s32 0, %v1011
      %v1013 = vrot.slane %v1004, %v1012
      %v1031 = vunpack.c.l.b16 %v988
      %v1032 = vunpack.c.l.b16 %v989
      %v1033 = vunpack.c.l.b16 %v990
      %v1034 = vunpack.c.l.b16 %v991
      %v1035 = vunpack.c.l.b16 %v992
      %v1036 = vunpack.c.l.b16 %v993
      %v1037 = vunpack.c.l.b16 %v994
      %v1038 = vunpack.c.l.b16 %v995
      %v1039 = vunpack.c.l.b16 %v996
      %v1040 = vunpack.c.l.b16 %v997
      %v1041 = vunpack.c.l.b16 %v998
      %v1042 = vunpack.c.l.b16 %v999
      %v1043 = vunpack.c.l.b16 %v1000
      %v1044 = vunpack.c.l.b16 %v1001
      %v1045 = vunpack.c.l.b16 %v1002
      %v1046 = vunpack.c.l.b16 %v1003
      %v1047 = vpack.c.b16 %v1032, %v1031
      %v1048 = vpack.c.b16 %v1034, %v1033
      %v1049 = vpack.c.b16 %v1036, %v1035
      %v1050 = vpack.c.b16 %v1038, %v1037
      %v1051 = vpack.c.b16 %v1040, %v1039
      %v1052 = vpack.c.b16 %v1042, %v1041
      %v1053 = vpack.c.b16 %v1044, %v1043
      %v1054 = vpack.c.b16 %v1046, %v1045
      %1063 = vmatprep.subr.bf16.mxu0 0
      %1064 = vmatpush1.bf16.msra.mxu0 %v1047
      %1065 = vmatprep.subr.bf16.mxu0 0
      %1066 = vmatpush1.bf16.msra.mxu0 %v1048
      %1067 = vmatprep.subr.bf16.mxu0 0
      %1068 = vmatpush1.bf16.msra.mxu0 %v1049
      %1069 = vmatprep.subr.bf16.mxu0 0
      %1070 = vmatpush1.bf16.msra.mxu0 %v1050
      %1071 = vmatprep.subr.bf16.mxu0 0
      %1072 = vmatpush1.bf16.msra.mxu0 %v1051
      %1073 = vmatprep.subr.bf16.mxu0 0
      %1074 = vmatpush1.bf16.msra.mxu0 %v1052
      %1075 = vmatprep.subr.bf16.mxu0 0
      %1076 = vmatpush1.bf16.msra.mxu0 %v1053
      %1077 = vmatprep.subr.bf16.mxu0 0
      %1078 = vmatpush1.bf16.msra.mxu0 %v1054
      %1079 = vmatprep.subr.bf16.mxu0 0
      %1080 = vmatpush1.bf16.msra.mxu0 0
      %1081 = vmatprep.subr.bf16.mxu0 0
      %1082 = vmatpush1.bf16.msra.mxu0 0
      %1083 = vmatprep.subr.bf16.mxu0 0
      %1084 = vmatpush1.bf16.msra.mxu0 0
      %1085 = vmatprep.subr.bf16.mxu0 0
      %1086 = vmatpush1.bf16.msra.mxu0 0
      %1087 = vmatprep.subr.bf16.mxu0 0
      %1088 = vmatpush1.bf16.msra.mxu0 0
      %1089 = vmatprep.subr.bf16.mxu0 0
      %1090 = vmatpush1.bf16.msra.mxu0 0
      %1091 = vmatprep.subr.bf16.mxu0 0
      %1092 = vmatpush1.bf16.msra.mxu0 0
      %1093 = vmatprep.subr.bf16.mxu0 0
      %1094 = vmatpush1.bf16.msra.mxu0 0
      %1095 = vmatprep.mubr.bf16.mxu0 0
      %1096 = vmatmul.mubr.bf16.gmra.mrb[0].mxu0 %v1005
      %v1097 = vpop.f32.mrb[0].mxu0
      %v1098 = vadd.f32 %v1013, %v1097
      %v1099 = vpop.f32.mrb[0].mxu0
      %v1100 = vpop.f32.mrb[0].mxu0
      %v1101 = vadd.f32 %v1013, %v1100
      %v1102 = vpop.f32.mrb[0].mxu0
      %1103 = vmatprep.mubr.bf16.mxu0 0
      %1104 = vmatmul.mubr.bf16.gmra.mrb[0].mxu0 %v1006
      %v1105 = vpop.f32.mrb[0].mxu0
      %v1106 = vadd.f32 %v1013, %v1105
      %v1107 = vpop.f32.mrb[0].mxu0
      %v1108 = vpop.f32.mrb[0].mxu0
      %v1109 = vadd.f32 %v1013, %v1108
      %v1110 = vpop.f32.mrb[0].mxu0
      %1111 = vmatprep.mubr.bf16.mxu0 0
      %1112 = vmatmul.mubr.bf16.gmra.mrb[0].mxu0 %v1007
      %v1113 = vpop.f32.mrb[0].mxu0
      %v1114 = vadd.f32 %v1013, %v1113
      %v1115 = vpop.f32.mrb[0].mxu0
      %v1116 = vpop.f32.mrb[0].mxu0
      %v1117 = vadd.f32 %v1013, %v1116
      %v1118 = vpop.f32.mrb[0].mxu0
      %1119 = vmatprep.mubr.bf16.mxu0 0
      %1120 = vmatmul.mubr.bf16.gmra.mrb[0].mxu0 %v1008
      %v1121 = vpop.f32.mrb[0].mxu0
      %v1122 = vadd.f32 %v1013, %v1121
      %v1123 = vpop.f32.mrb[0].mxu0
      %v1124 = vpop.f32.mrb[0].mxu0
      %v1125 = vadd.f32 %v1013, %v1124
      %v1126 = vpop.f32.mrb[0].mxu0
      %1127 = vdwg.mxu0
      %v1128 = vmul.f32 %v1098, 0.5
      %v1129 = vmul.f32 %v1101, 0.5
      %v1130 = vmul.f32 %v1106, 0.5
      %v1131 = vmul.f32 %v1109, 0.5
      %v1132 = vmul.f32 %v1114, 0.5
      %v1133 = vmul.f32 %v1117, 0.5
      %v1134 = vmul.f32 %v1122, 0.5
      %v1135 = vmul.f32 %v1125, 0.5
      %v1136 = vmul.f32 %v1128, 1.442695
      %v1137 = vpow.pop %v1136
      %v1138 = vmul.f32 %v1129, 1.442695
      %v1139 = vpow.pop %v1138
      %v1140 = vmul.f32 %v1130, 1.442695
      %v1141 = vpow.pop %v1140
      %v1142 = vmul.f32 %v1131, 1.442695
      %v1143 = vpow.pop %v1142
      %v1144 = vmul.f32 %v1132, 1.442695
      %v1145 = vpow.pop %v1144
      %v1146 = vmul.f32 %v1133, 1.442695
      %v1147 = vpow.pop %v1146
      %v1148 = vmul.f32 %v1134, 1.442695
      %v1149 = vpow.pop %v1148
      %v1150 = vmul.f32 %v1135, 1.442695
      %v1151 = vpow.pop %v1150
      %1160 = vrot.lane.b32.xlu0 %v175, 66
      %v1161 = vpop.permute.xlu0 %1160
      %1162 = vrot.lane.b32.xlu0 %v176, 66
      %v1163 = vpop.permute.xlu0 %1162
      %1164 = vrot.lane.b32.xlu0 %v177, 66
      %v1165 = vpop.permute.xlu0 %1164
      %1166 = vrot.lane.b32.xlu0 %v178, 66
      %v1167 = vpop.permute.xlu0 %1166
      %1168 = vrot.lane.b32.xlu0 %v179, 66
      %v1169 = vpop.permute.xlu0 %1168
      %1170 = vrot.lane.b32.xlu0 %v180, 66
      %v1171 = vpop.permute.xlu0 %1170
      %1172 = vrot.lane.b32.xlu0 %v181, 66
      %v1173 = vpop.permute.xlu0 %1172
      %1174 = vrot.lane.b32.xlu0 %v182, 66
      %v1175 = vpop.permute.xlu0 %1174
      %v1184 = vmul.f32 %v1137, %v1161
      %v1185 = vmul.f32 %v1139, %v1163
      %v1186 = vmul.f32 %v1141, %v1165
      %v1187 = vmul.f32 %v1143, %v1167
      %v1188 = vmul.f32 %v1145, %v1169
      %v1189 = vmul.f32 %v1147, %v1171
      %v1190 = vmul.f32 %v1149, %v1173
      %v1191 = vmul.f32 %v1151, %v1175
      %1200 = vrot.lane.b32.xlu0 %v1184, 126
      %v1201 = vpop.permute.xlu0 %1200
      %1202 = vrot.lane.b32.xlu0 %v1185, 126
      %v1203 = vpop.permute.xlu0 %1202
      %1204 = vrot.lane.b32.xlu0 %v1186, 126
      %v1205 = vpop.permute.xlu0 %1204
      %1206 = vrot.lane.b32.xlu0 %v1187, 126
      %v1207 = vpop.permute.xlu0 %1206
      %1208 = vrot.lane.b32.xlu0 %v1188, 126
      %v1209 = vpop.permute.xlu0 %1208
      %1210 = vrot.lane.b32.xlu0 %v1189, 126
      %v1211 = vpop.permute.xlu0 %1210
      %1212 = vrot.lane.b32.xlu0 %v1190, 126
      %v1213 = vpop.permute.xlu0 %1212
      %1214 = vrot.lane.b32.xlu0 %v1191, 126
      %v1215 = vpop.permute.xlu0 %1214
      %v1224 = vadd.f32 %v1098, %v1201
      %v1225 = vadd.f32 %v1101, %v1203
      %v1226 = vadd.f32 %v1106, %v1205
      %v1227 = vadd.f32 %v1109, %v1207
      %v1228 = vadd.f32 %v1114, %v1209
      %v1229 = vadd.f32 %v1117, %v1211
      %v1230 = vadd.f32 %v1122, %v1213
      %v1231 = vadd.f32 %v1125, %v1215
      %1240 = vrot.lane.b32.xlu0 %v1224, 40
      %v1241 = vpop.permute.xlu0 %1240
      %1242 = vrot.lane.b32.xlu0 %v1225, 40
      %v1243 = vpop.permute.xlu0 %1242
      %1244 = vrot.lane.b32.xlu0 %v1226, 40
      %v1245 = vpop.permute.xlu0 %1244
      %1246 = vrot.lane.b32.xlu0 %v1227, 40
      %v1247 = vpop.permute.xlu0 %1246
      %1248 = vrot.lane.b32.xlu0 %v1228, 40
      %v1249 = vpop.permute.xlu0 %1248
      %1250 = vrot.lane.b32.xlu0 %v1229, 40
      %v1251 = vpop.permute.xlu0 %1250
      %1252 = vrot.lane.b32.xlu0 %v1230, 40
      %v1253 = vpop.permute.xlu0 %1252
      %1254 = vrot.lane.b32.xlu0 %v1231, 40
      %v1255 = vpop.permute.xlu0 %1254
      %vm1264 = vcmask 343360
      %1265 = vst.msk [vmem:[%s172] sm:$0xff] %vm1264, %v1241
      %1266 = vst.msk [vmem:[%s172 + $0x8] sm:$0xff] %vm1264, %v1243
      %1267 = vst.msk [vmem:[%s172 + $0x10] sm:$0xff] %vm1264, %v1245
      %1268 = vst.msk [vmem:[%s172 + $0x18] sm:$0xff] %vm1264, %v1247
      %1269 = vst.msk [vmem:[%s172 + $0x20] sm:$0xff] %vm1264, %v1249
      %1270 = vst.msk [vmem:[%s172 + $0x28] sm:$0xff] %vm1264, %v1251
      %1271 = vst.msk [vmem:[%s172 + $0x30] sm:$0xff] %vm1264, %v1253
      %1272 = vst.msk [vmem:[%s172 + $0x38] sm:$0xff] %vm1264, %v1255
      %1281 = vrot.lane.b32.xlu0 %v1098, 42
      %v1282 = vpop.permute.xlu0 %1281
      %1283 = vrot.lane.b32.xlu0 %v1101, 42
      %v1284 = vpop.permute.xlu0 %1283
      %1285 = vrot.lane.b32.xlu0 %v1106, 42
      %v1286 = vpop.permute.xlu0 %1285
      %1287 = vrot.lane.b32.xlu0 %v1109, 42
      %v1288 = vpop.permute.xlu0 %1287
      %1289 = vrot.lane.b32.xlu0 %v1114, 42
      %v1290 = vpop.permute.xlu0 %1289
      %1291 = vrot.lane.b32.xlu0 %v1117, 42
      %v1292 = vpop.permute.xlu0 %1291
      %1293 = vrot.lane.b32.xlu0 %v1122, 42
      %v1294 = vpop.permute.xlu0 %1293
      %1295 = vrot.lane.b32.xlu0 %v1125, 42
      %v1296 = vpop.permute.xlu0 %1295
      %vm1305 = vcmask 359760
      %1306 = vst.msk [vmem:[%s172] sm:$0xff] %vm1305, %v1282
      %1307 = vst.msk [vmem:[%s172 + $0x8] sm:$0xff] %vm1305, %v1284
      %1308 = vst.msk [vmem:[%s172 + $0x10] sm:$0xff] %vm1305, %v1286
      %1309 = vst.msk [vmem:[%s172 + $0x18] sm:$0xff] %vm1305, %v1288
      %1310 = vst.msk [vmem:[%s172 + $0x20] sm:$0xff] %vm1305, %v1290
      %1311 = vst.msk [vmem:[%s172 + $0x28] sm:$0xff] %vm1305, %v1292
      %1312 = vst.msk [vmem:[%s172 + $0x30] sm:$0xff] %vm1305, %v1294
      %1313 = vst.msk [vmem:[%s172 + $0x38] sm:$0xff] %vm1305, %v1296
      %vm1314 = vcmask 376160
      %1315 = vst.msk [vmem:[%s172] sm:$0xff] %vm1314, %v1282
      %1316 = vst.msk [vmem:[%s172 + $0x8] sm:$0xff] %vm1314, %v1284
      %1317 = vst.msk [vmem:[%s172 + $0x10] sm:$0xff] %vm1314, %v1286
      %1318 = vst.msk [vmem:[%s172 + $0x18] sm:$0xff] %vm1314, %v1288
      %1319 = vst.msk [vmem:[%s172 + $0x20] sm:$0xff] %vm1314, %v1290
      %1320 = vst.msk [vmem:[%s172 + $0x28] sm:$0xff] %vm1314, %v1292
      %1321 = vst.msk [vmem:[%s172 + $0x30] sm:$0xff] %vm1314, %v1294
      %1322 = vst.msk [vmem:[%s172 + $0x38] sm:$0xff] %vm1314, %v1296
      %vm1323 = vcmask 1047920
      %1324 = vst.msk [vmem:[%s172] sm:$0xff] %vm1323, 0.0
      %1325 = vst.msk [vmem:[%s172 + $0x8] sm:$0xff] %vm1323, 0.0
      %1326 = vst.msk [vmem:[%s172 + $0x10] sm:$0xff] %vm1323, 0.0
      %1327 = vst.msk [vmem:[%s172 + $0x18] sm:$0xff] %vm1323, 0.0
      %1328 = vst.msk [vmem:[%s172 + $0x20] sm:$0xff] %vm1323, 0.0
      %1329 = vst.msk [vmem:[%s172 + $0x28] sm:$0xff] %vm1323, 0.0
      %1330 = vst.msk [vmem:[%s172 + $0x30] sm:$0xff] %vm1323, 0.0
      %1331 = vst.msk [vmem:[%s172 + $0x38] sm:$0xff] %vm1323, 0.0
      %v1332 = vld [vmem:[%s1 + $0x10] sm:$0x1]
      %v1333 = vunpack.c.l.bf16 %v1332
      %v1334 = vld [vmem:[%s2 + $0x4] sm:$0x1]
      %1335 = vset.pattern.permute.xlu0 0
      %1336 = vperm.xlu0 %1335, %v1224
      %v1337 = vpop.permute.xlu0 %1336
      %1339 = vset.pattern.permute.xlu0 0
      %1340 = vperm.xlu0 %1339, %v1225
      %v1341 = vpop.permute.xlu0 %1340
      %1343 = vset.pattern.permute.xlu0 0
      %1344 = vperm.xlu0 %1343, %v1226
      %v1345 = vpop.permute.xlu0 %1344
      %1347 = vset.pattern.permute.xlu0 0
      %1348 = vperm.xlu0 %1347, %v1227
      %v1349 = vpop.permute.xlu0 %1348
      %1351 = vset.pattern.permute.xlu0 0
      %1352 = vperm.xlu0 %1351, %v1228
      %v1353 = vpop.permute.xlu0 %1352
      %1355 = vset.pattern.permute.xlu0 0
      %1356 = vperm.xlu0 %1355, %v1229
      %v1357 = vpop.permute.xlu0 %1356
      %1359 = vset.pattern.permute.xlu0 0
      %1360 = vperm.xlu0 %1359, %v1230
      %v1361 = vpop.permute.xlu0 %1360
      %1363 = vset.pattern.permute.xlu0 0
      %1364 = vperm.xlu0 %1363, %v1231
      %v1365 = vpop.permute.xlu0 %1364
      %v1367 = vlaneseq
      %v1368 = vshrl.u32 %v1367, 7
      %v1369 = vsub.s32 0, %v1368
      %v1370 = vrot.slane %v1333, %v1369
      %v1371 = vmul.f32 %v1337, %v1370
      %v1372 = vmul.f32 %v1341, %v1370
      %v1373 = vmul.f32 %v1345, %v1370
      %v1374 = vmul.f32 %v1349, %v1370
      %v1375 = vmul.f32 %v1353, %v1370
      %v1376 = vmul.f32 %v1357, %v1370
      %v1377 = vmul.f32 %v1361, %v1370
      %v1378 = vmul.f32 %v1365, %v1370
      %1379 = vset.pattern.permute.xlu0 1
      %1380 = vperm.xlu0 %1379, %v1224
      %v1381 = vpop.permute.xlu0 %1380
      %1383 = vset.pattern.permute.xlu0 1
      %1384 = vperm.xlu0 %1383, %v1225
      %v1385 = vpop.permute.xlu0 %1384
      %1387 = vset.pattern.permute.xlu0 1
      %1388 = vperm.xlu0 %1387, %v1226
      %v1389 = vpop.permute.xlu0 %1388
      %1391 = vset.pattern.permute.xlu0 1
      %1392 = vperm.xlu0 %1391, %v1227
      %v1393 = vpop.permute.xlu0 %1392
      %1395 = vset.pattern.permute.xlu0 1
      %1396 = vperm.xlu0 %1395, %v1228
      %v1397 = vpop.permute.xlu0 %1396
      %1399 = vset.pattern.permute.xlu0 1
      %1400 = vperm.xlu0 %1399, %v1229
      %v1401 = vpop.permute.xlu0 %1400
      %1403 = vset.pattern.permute.xlu0 1
      %1404 = vperm.xlu0 %1403, %v1230
      %v1405 = vpop.permute.xlu0 %1404
      %1407 = vset.pattern.permute.xlu0 1
      %1408 = vperm.xlu0 %1407, %v1231
      %v1409 = vpop.permute.xlu0 %1408
      %v1411 = vlaneseq
      %v1412 = vshrl.u32 %v1411, 7
      %v1413 = vsub.s32 1, %v1412
      %v1414 = vrot.slane %v1333, %v1413
      %v1415 = vmul.f32 %v1381, %v1414
      %v1416 = vmul.f32 %v1385, %v1414
      %v1417 = vmul.f32 %v1389, %v1414
      %v1418 = vmul.f32 %v1393, %v1414
      %v1419 = vmul.f32 %v1397, %v1414
      %v1420 = vmul.f32 %v1401, %v1414
      %v1421 = vmul.f32 %v1405, %v1414
      %v1422 = vmul.f32 %v1409, %v1414
      %v1423 = vadd.f32 %v1371, %v1415
      %v1424 = vadd.f32 %v1372, %v1416
      %v1425 = vadd.f32 %v1373, %v1417
      %v1426 = vadd.f32 %v1374, %v1418
      %v1427 = vadd.f32 %v1375, %v1419
      %v1428 = vadd.f32 %v1376, %v1420
      %v1429 = vadd.f32 %v1377, %v1421
      %v1430 = vadd.f32 %v1378, %v1422
      %v1432 = vlaneseq
      %v1433 = vshrl.u32 %v1432, 7
      %v1434 = vsub.s32 0, %v1433
      %v1435 = vrot.slane %v1334, %v1434
      %v1437 = vadd.f32 %v1423, %v1435
      %v1438 = vadd.f32 %v1424, %v1435
      %v1439 = vadd.f32 %v1425, %v1435
      %v1440 = vadd.f32 %v1426, %v1435
      %v1441 = vadd.f32 %v1427, %v1435
      %v1442 = vadd.f32 %v1428, %v1435
      %v1443 = vadd.f32 %v1429, %v1435
      %v1444 = vadd.f32 %v1430, %v1435
      %v1445 = vmul.f32 %v1437, 4.5
      %v1446 = vmul.f32 %v1438, 4.5
      %v1447 = vmul.f32 %v1439, 4.5
      %v1448 = vmul.f32 %v1440, 4.5
      %v1449 = vmul.f32 %v1441, 4.5
      %v1450 = vmul.f32 %v1442, 4.5
      %v1451 = vmul.f32 %v1443, 4.5
      %v1452 = vmul.f32 %v1444, 4.5
      %v1453 = vmin.f32 %v1445, 20.0
      %v1454 = vmin.f32 %v1446, 20.0
      %v1455 = vmin.f32 %v1447, 20.0
      %v1456 = vmin.f32 %v1448, 20.0
      %v1457 = vmin.f32 %v1449, 20.0
      %v1458 = vmin.f32 %v1450, 20.0
      %v1459 = vmin.f32 %v1451, 20.0
      %v1460 = vmin.f32 %v1452, 20.0
      %vm1461 = vcmp.gt.f32.partialorder %v1445, 20.0
      %vm1462 = vcmp.gt.f32.partialorder %v1446, 20.0
      %vm1463 = vcmp.gt.f32.partialorder %v1447, 20.0
      %vm1464 = vcmp.gt.f32.partialorder %v1448, 20.0
      %vm1465 = vcmp.gt.f32.partialorder %v1449, 20.0
      %vm1466 = vcmp.gt.f32.partialorder %v1450, 20.0
      %vm1467 = vcmp.gt.f32.partialorder %v1451, 20.0
      %vm1468 = vcmp.gt.f32.partialorder %v1452, 20.0
      %v1469 = vmul.f32 %v1453, 1.442695
      %v1470 = vpow.pop %v1469
      %v1471 = vmul.f32 %v1454, 1.442695
      %v1472 = vpow.pop %v1471
      %v1473 = vmul.f32 %v1455, 1.442695
      %v1474 = vpow.pop %v1473
      %v1475 = vmul.f32 %v1456, 1.442695
      %v1476 = vpow.pop %v1475
      %v1477 = vmul.f32 %v1457, 1.442695
      %v1478 = vpow.pop %v1477
      %v1479 = vmul.f32 %v1458, 1.442695
      %v1480 = vpow.pop %v1479
      %v1481 = vmul.f32 %v1459, 1.442695
      %v1482 = vpow.pop %v1481
      %v1483 = vmul.f32 %v1460, 1.442695
      %v1484 = vpow.pop %v1483
      %v1485 = vadd.f32 %v1470, 1.0
      %v1486 = vlog2.pop %v1485
      %v1487 = vmul.f32 %v1486, 0.6931472
      %v1488 = vmul.f32 -0.5, %v1470
      %v1489 = vadd.f32 %v1488, 1.0
      %v1490 = vmul.f32 %v1489, %v1470
      %v1491 = vand.u32 2147483647, %v1470
      %vm1492 = vcmp.lt.f32.partialorder %v1491, 0.0004427343
      %v1493 = vsel %vm1492, %v1490, %v1487
      %v1494 = vadd.f32 %v1472, 1.0
      %v1495 = vlog2.pop %v1494
      %v1496 = vmul.f32 %v1495, 0.6931472
      %v1497 = vmul.f32 -0.5, %v1472
      %v1498 = vadd.f32 %v1497, 1.0
      %v1499 = vmul.f32 %v1498, %v1472
      %v1500 = vand.u32 2147483647, %v1472
      %vm1501 = vcmp.lt.f32.partialorder %v1500, 0.0004427343
      %v1502 = vsel %vm1501, %v1499, %v1496
      %v1503 = vadd.f32 %v1474, 1.0
      %v1504 = vlog2.pop %v1503
      %v1505 = vmul.f32 %v1504, 0.6931472
      %v1506 = vmul.f32 -0.5, %v1474
      %v1507 = vadd.f32 %v1506, 1.0
      %v1508 = vmul.f32 %v1507, %v1474
      %v1509 = vand.u32 2147483647, %v1474
      %vm1510 = vcmp.lt.f32.partialorder %v1509, 0.0004427343
      %v1511 = vsel %vm1510, %v1508, %v1505
      %v1512 = vadd.f32 %v1476, 1.0
      %v1513 = vlog2.pop %v1512
      %v1514 = vmul.f32 %v1513, 0.6931472
      %v1515 = vmul.f32 -0.5, %v1476
      %v1516 = vadd.f32 %v1515, 1.0
      %v1517 = vmul.f32 %v1516, %v1476
      %v1518 = vand.u32 2147483647, %v1476
      %vm1519 = vcmp.lt.f32.partialorder %v1518, 0.0004427343
      %v1520 = vsel %vm1519, %v1517, %v1514
      %v1521 = vadd.f32 %v1478, 1.0
      %v1522 = vlog2.pop %v1521
      %v1523 = vmul.f32 %v1522, 0.6931472
      %v1524 = vmul.f32 -0.5, %v1478
      %v1525 = vadd.f32 %v1524, 1.0
      %v1526 = vmul.f32 %v1525, %v1478
      %v1527 = vand.u32 2147483647, %v1478
      %vm1528 = vcmp.lt.f32.partialorder %v1527, 0.0004427343
      %v1529 = vsel %vm1528, %v1526, %v1523
      %v1530 = vadd.f32 %v1480, 1.0
      %v1531 = vlog2.pop %v1530
      %v1532 = vmul.f32 %v1531, 0.6931472
      %v1533 = vmul.f32 -0.5, %v1480
      %v1534 = vadd.f32 %v1533, 1.0
      %v1535 = vmul.f32 %v1534, %v1480
      %v1536 = vand.u32 2147483647, %v1480
      %vm1537 = vcmp.lt.f32.partialorder %v1536, 0.0004427343
      %v1538 = vsel %vm1537, %v1535, %v1532
      %v1539 = vadd.f32 %v1482, 1.0
      %v1540 = vlog2.pop %v1539
      %v1541 = vmul.f32 %v1540, 0.6931472
      %v1542 = vmul.f32 -0.5, %v1482
      %v1543 = vadd.f32 %v1542, 1.0
      %v1544 = vmul.f32 %v1543, %v1482
      %v1545 = vand.u32 2147483647, %v1482
      %vm1546 = vcmp.lt.f32.partialorder %v1545, 0.0004427343
      %v1547 = vsel %vm1546, %v1544, %v1541
      %v1548 = vadd.f32 %v1484, 1.0
      %v1549 = vlog2.pop %v1548
      %v1550 = vmul.f32 %v1549, 0.6931472
      %v1551 = vmul.f32 -0.5, %v1484
      %v1552 = vadd.f32 %v1551, 1.0
      %v1553 = vmul.f32 %v1552, %v1484
      %v1554 = vand.u32 2147483647, %v1484
      %vm1555 = vcmp.lt.f32.partialorder %v1554, 0.0004427343
      %v1556 = vsel %vm1555, %v1553, %v1550
      %v1557 = vmul.f32 %v1493, %v435
      %v1558 = vmul.f32 %v1502, %v435
      %v1559 = vmul.f32 %v1511, %v435
      %v1560 = vmul.f32 %v1520, %v435
      %v1561 = vmul.f32 %v1529, %v435
      %v1562 = vmul.f32 %v1538, %v435
      %v1563 = vmul.f32 %v1547, %v435
      %v1564 = vmul.f32 %v1556, %v435
      %v1565 = vsel %vm1461, %v1437, %v1557
      %v1566 = vsel %vm1462, %v1438, %v1558
      %v1567 = vsel %vm1463, %v1439, %v1559
      %v1568 = vsel %vm1464, %v1440, %v1560
      %v1569 = vsel %vm1465, %v1441, %v1561
      %v1570 = vsel %vm1466, %v1442, %v1562
      %v1571 = vsel %vm1467, %v1443, %v1563
      %v1572 = vsel %vm1468, %v1444, %v1564
      %v1573 = vld [vmem:[%s1 + $0x14] sm:$0xf]
      %v1574 = vld [vmem:[%s1 + $0x34] sm:$0xf]
      %v1575 = vld [vmem:[%s1 + $0x54] sm:$0xf]
      %v1576 = vld [vmem:[%s1 + $0x74] sm:$0xf]
      %v1577 = vld [vmem:[%s1 + $0x94] sm:$0xf]
      %v1578 = vld [vmem:[%s1 + $0xb4] sm:$0xf]
      %v1579 = vld [vmem:[%s1 + $0xd4] sm:$0xf]
      %v1580 = vld [vmem:[%s1 + $0xf4] sm:$0xf]
      %v1581 = vld [vmem:[%s1 + $0x114] sm:$0xf]
      %v1582 = vld [vmem:[%s1 + $0x134] sm:$0xf]
      %v1583 = vld [vmem:[%s1 + $0x154] sm:$0xf]
      %v1584 = vld [vmem:[%s1 + $0x174] sm:$0xf]
      %v1585 = vld [vmem:[%s1 + $0x194] sm:$0xf]
      %v1586 = vld [vmem:[%s1 + $0x1b4] sm:$0xf]
      %v1587 = vld [vmem:[%s1 + $0x1d4] sm:$0xf]
      %v1588 = vld [vmem:[%s1 + $0x1f4] sm:$0xf]
      %v1589 = vld [vmem:[%s2 + $0x5] sm:$0x1]
      %v1590 = vpack.c.bf16 %v1566, %v1565
      %v1591 = vpack.c.bf16 %v1568, %v1567
      %v1592 = vpack.c.bf16 %v1570, %v1569
      %v1593 = vpack.c.bf16 %v1572, %v1571
      %v1595 = vlaneseq
      %v1596 = vshrl.u32 %v1595, 7
      %v1597 = vsub.s32 0, %v1596
      %v1598 = vrot.slane %v1589, %v1597
      %v1616 = vunpack.c.l.b16 %v1573
      %v1617 = vunpack.c.l.b16 %v1574
      %v1618 = vunpack.c.l.b16 %v1575
      %v1619 = vunpack.c.l.b16 %v1576
      %v1620 = vunpack.c.l.b16 %v1577
      %v1621 = vunpack.c.l.b16 %v1578
      %v1622 = vunpack.c.l.b16 %v1579
      %v1623 = vunpack.c.l.b16 %v1580
      %v1624 = vunpack.c.l.b16 %v1581
      %v1625 = vunpack.c.l.b16 %v1582
      %v1626 = vunpack.c.l.b16 %v1583
      %v1627 = vunpack.c.l.b16 %v1584
      %v1628 = vunpack.c.l.b16 %v1585
      %v1629 = vunpack.c.l.b16 %v1586
      %v1630 = vunpack.c.l.b16 %v1587
      %v1631 = vunpack.c.l.b16 %v1588
      %v1632 = vpack.c.b16 %v1617, %v1616
      %v1633 = vpack.c.b16 %v1619, %v1618
      %v1634 = vpack.c.b16 %v1621, %v1620
      %v1635 = vpack.c.b16 %v1623, %v1622
      %v1636 = vpack.c.b16 %v1625, %v1624
      %v1637 = vpack.c.b16 %v1627, %v1626
      %v1638 = vpack.c.b16 %v1629, %v1628
      %v1639 = vpack.c.b16 %v1631, %v1630
      %1648 = vmatprep.subr.bf16.mxu0 0
      %1649 = vmatpush1.bf16.msra.mxu0 %v1632
      %1650 = vmatprep.subr.bf16.mxu0 0
      %1651 = vmatpush1.bf16.msra.mxu0 %v1633
      %1652 = vmatprep.subr.bf16.mxu0 0
      %1653 = vmatpush1.bf16.msra.mxu0 %v1634
      %1654 = vmatprep.subr.bf16.mxu0 0
      %1655 = vmatpush1.bf16.msra.mxu0 %v1635
      %1656 = vmatprep.subr.bf16.mxu0 0
      %1657 = vmatpush1.bf16.msra.mxu0 %v1636
      %1658 = vmatprep.subr.bf16.mxu0 0
      %1659 = vmatpush1.bf16.msra.mxu0 %v1637
      %1660 = vmatprep.subr.bf16.mxu0 0
      %1661 = vmatpush1.bf16.msra.mxu0 %v1638
      %1662 = vmatprep.subr.bf16.mxu0 0
      %1663 = vmatpush1.bf16.msra.mxu0 %v1639
      %1664 = vmatprep.subr.bf16.mxu0 0
      %1665 = vmatpush1.bf16.msra.mxu0 0
      %1666 = vmatprep.subr.bf16.mxu0 0
      %1667 = vmatpush1.bf16.msra.mxu0 0
      %1668 = vmatprep.subr.bf16.mxu0 0
      %1669 = vmatpush1.bf16.msra.mxu0 0
      %1670 = vmatprep.subr.bf16.mxu0 0
      %1671 = vmatpush1.bf16.msra.mxu0 0
      %1672 = vmatprep.subr.bf16.mxu0 0
      %1673 = vmatpush1.bf16.msra.mxu0 0
      %1674 = vmatprep.subr.bf16.mxu0 0
      %1675 = vmatpush1.bf16.msra.mxu0 0
      %1676 = vmatprep.subr.bf16.mxu0 0
      %1677 = vmatpush1.bf16.msra.mxu0 0
      %1678 = vmatprep.subr.bf16.mxu0 0
      %1679 = vmatpush1.bf16.msra.mxu0 0
      %1680 = vmatprep.mubr.bf16.mxu0 0
      %1681 = vmatmul.mubr.bf16.gmra.mrb[0].mxu0 %v1590
      %v1682 = vpop.f32.mrb[0].mxu0
      %v1683 = vadd.f32 %v1598, %v1682
      %v1684 = vpop.f32.mrb[0].mxu0
      %v1685 = vpop.f32.mrb[0].mxu0
      %v1686 = vadd.f32 %v1598, %v1685
      %v1687 = vpop.f32.mrb[0].mxu0
      %1688 = vmatprep.mubr.bf16.mxu0 0
      %1689 = vmatmul.mubr.bf16.gmra.mrb[0].mxu0 %v1591
      %v1690 = vpop.f32.mrb[0].mxu0
      %v1691 = vadd.f32 %v1598, %v1690
      %v1692 = vpop.f32.mrb[0].mxu0
      %v1693 = vpop.f32.mrb[0].mxu0
      %v1694 = vadd.f32 %v1598, %v1693
      %v1695 = vpop.f32.mrb[0].mxu0
      %1696 = vmatprep.mubr.bf16.mxu0 0
      %1697 = vmatmul.mubr.bf16.gmra.mrb[0].mxu0 %v1592
      %v1698 = vpop.f32.mrb[0].mxu0
      %v1699 = vadd.f32 %v1598, %v1698
      %v1700 = vpop.f32.mrb[0].mxu0
      %v1701 = vpop.f32.mrb[0].mxu0
      %v1702 = vadd.f32 %v1598, %v1701
      %v1703 = vpop.f32.mrb[0].mxu0
      %1704 = vmatprep.mubr.bf16.mxu0 0
      %1705 = vmatmul.mubr.bf16.gmra.mrb[0].mxu0 %v1593
      %v1706 = vpop.f32.mrb[0].mxu0
      %v1707 = vadd.f32 %v1598, %v1706
      %v1708 = vpop.f32.mrb[0].mxu0
      %v1709 = vpop.f32.mrb[0].mxu0
      %v1710 = vadd.f32 %v1598, %v1709
      %v1711 = vpop.f32.mrb[0].mxu0
      %1712 = vdwg.mxu0
      %v1713 = vmul.f32 %v1683, 4.5
      %v1714 = vmul.f32 %v1686, 4.5
      %v1715 = vmul.f32 %v1691, 4.5
      %v1716 = vmul.f32 %v1694, 4.5
      %v1717 = vmul.f32 %v1699, 4.5
      %v1718 = vmul.f32 %v1702, 4.5
      %v1719 = vmul.f32 %v1707, 4.5
      %v1720 = vmul.f32 %v1710, 4.5
      %v1721 = vmin.f32 %v1713, 20.0
      %v1722 = vmin.f32 %v1714, 20.0
      %v1723 = vmin.f32 %v1715, 20.0
      %v1724 = vmin.f32 %v1716, 20.0
      %v1725 = vmin.f32 %v1717, 20.0
      %v1726 = vmin.f32 %v1718, 20.0
      %v1727 = vmin.f32 %v1719, 20.0
      %v1728 = vmin.f32 %v1720, 20.0
      %vm1729 = vcmp.gt.f32.partialorder %v1713, 20.0
      %vm1730 = vcmp.gt.f32.partialorder %v1714, 20.0
      %vm1731 = vcmp.gt.f32.partialorder %v1715, 20.0
      %vm1732 = vcmp.gt.f32.partialorder %v1716, 20.0
      %vm1733 = vcmp.gt.f32.partialorder %v1717, 20.0
      %vm1734 = vcmp.gt.f32.partialorder %v1718, 20.0
      %vm1735 = vcmp.gt.f32.partialorder %v1719, 20.0
      %vm1736 = vcmp.gt.f32.partialorder %v1720, 20.0
      %v1737 = vmul.f32 %v1721, 1.442695
      %v1738 = vpow.pop %v1737
      %v1739 = vmul.f32 %v1722, 1.442695
      %v1740 = vpow.pop %v1739
      %v1741 = vmul.f32 %v1723, 1.442695
      %v1742 = vpow.pop %v1741
      %v1743 = vmul.f32 %v1724, 1.442695
      %v1744 = vpow.pop %v1743
      %v1745 = vmul.f32 %v1725, 1.442695
      %v1746 = vpow.pop %v1745
      %v1747 = vmul.f32 %v1726, 1.442695
      %v1748 = vpow.pop %v1747
      %v1749 = vmul.f32 %v1727, 1.442695
      %v1750 = vpow.pop %v1749
      %v1751 = vmul.f32 %v1728, 1.442695
      %v1752 = vpow.pop %v1751
      %v1753 = vadd.f32 %v1738, 1.0
      %v1754 = vlog2.pop %v1753
      %v1755 = vmul.f32 %v1754, 0.6931472
      %v1756 = vmul.f32 -0.5, %v1738
      %v1757 = vadd.f32 %v1756, 1.0
      %v1758 = vmul.f32 %v1757, %v1738
      %v1759 = vand.u32 2147483647, %v1738
      %vm1760 = vcmp.lt.f32.partialorder %v1759, 0.0004427343
      %v1761 = vsel %vm1760, %v1758, %v1755
      %v1762 = vadd.f32 %v1740, 1.0
      %v1763 = vlog2.pop %v1762
      %v1764 = vmul.f32 %v1763, 0.6931472
      %v1765 = vmul.f32 -0.5, %v1740
      %v1766 = vadd.f32 %v1765, 1.0
      %v1767 = vmul.f32 %v1766, %v1740
      %v1768 = vand.u32 2147483647, %v1740
      %vm1769 = vcmp.lt.f32.partialorder %v1768, 0.0004427343
      %v1770 = vsel %vm1769, %v1767, %v1764
      %v1771 = vadd.f32 %v1742, 1.0
      %v1772 = vlog2.pop %v1771
      %v1773 = vmul.f32 %v1772, 0.6931472
      %v1774 = vmul.f32 -0.5, %v1742
      %v1775 = vadd.f32 %v1774, 1.0
      %v1776 = vmul.f32 %v1775, %v1742
      %v1777 = vand.u32 2147483647, %v1742
      %vm1778 = vcmp.lt.f32.partialorder %v1777, 0.0004427343
      %v1779 = vsel %vm1778, %v1776, %v1773
      %v1780 = vadd.f32 %v1744, 1.0
      %v1781 = vlog2.pop %v1780
      %v1782 = vmul.f32 %v1781, 0.6931472
      %v1783 = vmul.f32 -0.5, %v1744
      %v1784 = vadd.f32 %v1783, 1.0
      %v1785 = vmul.f32 %v1784, %v1744
      %v1786 = vand.u32 2147483647, %v1744
      %vm1787 = vcmp.lt.f32.partialorder %v1786, 0.0004427343
      %v1788 = vsel %vm1787, %v1785, %v1782
      %v1789 = vadd.f32 %v1746, 1.0
      %v1790 = vlog2.pop %v1789
      %v1791 = vmul.f32 %v1790, 0.6931472
      %v1792 = vmul.f32 -0.5, %v1746
      %v1793 = vadd.f32 %v1792, 1.0
      %v1794 = vmul.f32 %v1793, %v1746
      %v1795 = vand.u32 2147483647, %v1746
      %vm1796 = vcmp.lt.f32.partialorder %v1795, 0.0004427343
      %v1797 = vsel %vm1796, %v1794, %v1791
      %v1798 = vadd.f32 %v1748, 1.0
      %v1799 = vlog2.pop %v1798
      %v1800 = vmul.f32 %v1799, 0.6931472
      %v1801 = vmul.f32 -0.5, %v1748
      %v1802 = vadd.f32 %v1801, 1.0
      %v1803 = vmul.f32 %v1802, %v1748
      %v1804 = vand.u32 2147483647, %v1748
      %vm1805 = vcmp.lt.f32.partialorder %v1804, 0.0004427343
      %v1806 = vsel %vm1805, %v1803, %v1800
      %v1807 = vadd.f32 %v1750, 1.0
      %v1808 = vlog2.pop %v1807
      %v1809 = vmul.f32 %v1808, 0.6931472
      %v1810 = vmul.f32 -0.5, %v1750
      %v1811 = vadd.f32 %v1810, 1.0
      %v1812 = vmul.f32 %v1811, %v1750
      %v1813 = vand.u32 2147483647, %v1750
      %vm1814 = vcmp.lt.f32.partialorder %v1813, 0.0004427343
      %v1815 = vsel %vm1814, %v1812, %v1809
      %v1816 = vadd.f32 %v1752, 1.0
      %v1817 = vlog2.pop %v1816
      %v1818 = vmul.f32 %v1817, 0.6931472
      %v1819 = vmul.f32 -0.5, %v1752
      %v1820 = vadd.f32 %v1819, 1.0
      %v1821 = vmul.f32 %v1820, %v1752
      %v1822 = vand.u32 2147483647, %v1752
      %vm1823 = vcmp.lt.f32.partialorder %v1822, 0.0004427343
      %v1824 = vsel %vm1823, %v1821, %v1818
      %v1825 = vmul.f32 %v1761, %v435
      %v1826 = vmul.f32 %v1770, %v435
      %v1827 = vmul.f32 %v1779, %v435
      %v1828 = vmul.f32 %v1788, %v435
      %v1829 = vmul.f32 %v1797, %v435
      %v1830 = vmul.f32 %v1806, %v435
      %v1831 = vmul.f32 %v1815, %v435
      %v1832 = vmul.f32 %v1824, %v435
      %v1833 = vsel %vm1729, %v1683, %v1825
      %v1834 = vsel %vm1730, %v1686, %v1826
      %v1835 = vsel %vm1731, %v1691, %v1827
      %v1836 = vsel %vm1732, %v1694, %v1828
      %v1837 = vsel %vm1733, %v1699, %v1829
      %v1838 = vsel %vm1734, %v1702, %v1830
      %v1839 = vsel %vm1735, %v1707, %v1831
      %v1840 = vsel %vm1736, %v1710, %v1832
      %v1841 = vld [vmem:[%s1 + $0x18] sm:$0xf]
      %v1842 = vld [vmem:[%s1 + $0x38] sm:$0xf]
      %v1843 = vld [vmem:[%s1 + $0x58] sm:$0xf]
      %v1844 = vld [vmem:[%s1 + $0x78] sm:$0xf]
      %v1845 = vld [vmem:[%s1 + $0x98] sm:$0xf]
      %v1846 = vld [vmem:[%s1 + $0xb8] sm:$0xf]
      %v1847 = vld [vmem:[%s1 + $0xd8] sm:$0xf]
      %v1848 = vld [vmem:[%s1 + $0xf8] sm:$0xf]
      %v1849 = vld [vmem:[%s1 + $0x118] sm:$0xf]
      %v1850 = vld [vmem:[%s1 + $0x138] sm:$0xf]
      %v1851 = vld [vmem:[%s1 + $0x158] sm:$0xf]
      %v1852 = vld [vmem:[%s1 + $0x178] sm:$0xf]
      %v1853 = vld [vmem:[%s1 + $0x198] sm:$0xf]
      %v1854 = vld [vmem:[%s1 + $0x1b8] sm:$0xf]
      %v1855 = vld [vmem:[%s1 + $0x1d8] sm:$0xf]
      %v1856 = vld [vmem:[%s1 + $0x1f8] sm:$0xf]
      %v1857 = vld [vmem:[%s2 + $0x6] sm:$0x1]
      %v1858 = vpack.c.bf16 %v1834, %v1833
      %v1859 = vpack.c.bf16 %v1836, %v1835
      %v1860 = vpack.c.bf16 %v1838, %v1837
      %v1861 = vpack.c.bf16 %v1840, %v1839
      %v1863 = vlaneseq
      %v1864 = vshrl.u32 %v1863, 7
      %v1865 = vsub.s32 0, %v1864
      %v1866 = vrot.slane %v1857, %v1865
      %v1884 = vunpack.c.l.b16 %v1841
      %v1885 = vunpack.c.l.b16 %v1842
      %v1886 = vunpack.c.l.b16 %v1843
      %v1887 = vunpack.c.l.b16 %v1844
      %v1888 = vunpack.c.l.b16 %v1845
      %v1889 = vunpack.c.l.b16 %v1846
      %v1890 = vunpack.c.l.b16 %v1847
      %v1891 = vunpack.c.l.b16 %v1848
      %v1892 = vunpack.c.l.b16 %v1849
      %v1893 = vunpack.c.l.b16 %v1850
      %v1894 = vunpack.c.l.b16 %v1851
      %v1895 = vunpack.c.l.b16 %v1852
      %v1896 = vunpack.c.l.b16 %v1853
      %v1897 = vunpack.c.l.b16 %v1854
      %v1898 = vunpack.c.l.b16 %v1855
      %v1899 = vunpack.c.l.b16 %v1856
      %v1900 = vpack.c.b16 %v1885, %v1884
      %v1901 = vpack.c.b16 %v1887, %v1886
      %v1902 = vpack.c.b16 %v1889, %v1888
      %v1903 = vpack.c.b16 %v1891, %v1890
      %v1904 = vpack.c.b16 %v1893, %v1892
      %v1905 = vpack.c.b16 %v1895, %v1894
      %v1906 = vpack.c.b16 %v1897, %v1896
      %v1907 = vpack.c.b16 %v1899, %v1898
      %1916 = vmatprep.subr.bf16.mxu0 0
      %1917 = vmatpush1.bf16.msra.mxu0 %v1900
      %1918 = vmatprep.subr.bf16.mxu0 0
      %1919 = vmatpush1.bf16.msra.mxu0 %v1901
      %1920 = vmatprep.subr.bf16.mxu0 0
      %1921 = vmatpush1.bf16.msra.mxu0 %v1902
      %1922 = vmatprep.subr.bf16.mxu0 0
      %1923 = vmatpush1.bf16.msra.mxu0 %v1903
      %1924 = vmatprep.subr.bf16.mxu0 0
      %1925 = vmatpush1.bf16.msra.mxu0 %v1904
      %1926 = vmatprep.subr.bf16.mxu0 0
      %1927 = vmatpush1.bf16.msra.mxu0 %v1905
      %1928 = vmatprep.subr.bf16.mxu0 0
      %1929 = vmatpush1.bf16.msra.mxu0 %v1906
      %1930 = vmatprep.subr.bf16.mxu0 0
      %1931 = vmatpush1.bf16.msra.mxu0 %v1907
      %1932 = vmatprep.subr.bf16.mxu0 0
      %1933 = vmatpush1.bf16.msra.mxu0 0
      %1934 = vmatprep.subr.bf16.mxu0 0
      %1935 = vmatpush1.bf16.msra.mxu0 0
      %1936 = vmatprep.subr.bf16.mxu0 0
      %1937 = vmatpush1.bf16.msra.mxu0 0
      %1938 = vmatprep.subr.bf16.mxu0 0
      %1939 = vmatpush1.bf16.msra.mxu0 0
      %1940 = vmatprep.subr.bf16.mxu0 0
      %1941 = vmatpush1.bf16.msra.mxu0 0
      %1942 = vmatprep.subr.bf16.mxu0 0
      %1943 = vmatpush1.bf16.msra.mxu0 0
      %1944 = vmatprep.subr.bf16.mxu0 0
      %1945 = vmatpush1.bf16.msra.mxu0 0
      %1946 = vmatprep.subr.bf16.mxu0 0
      %1947 = vmatpush1.bf16.msra.mxu0 0
      %1948 = vmatprep.mubr.bf16.mxu0 0
      %1949 = vmatmul.mubr.bf16.gmra.mrb[0].mxu0 %v1858
      %v1950 = vpop.f32.mrb[0].mxu0
      %v1951 = vadd.f32 %v1866, %v1950
      %v1952 = vpop.f32.mrb[0].mxu0
      %v1953 = vpop.f32.mrb[0].mxu0
      %v1954 = vadd.f32 %v1866, %v1953
      %v1955 = vpop.f32.mrb[0].mxu0
      %1956 = vmatprep.mubr.bf16.mxu0 0
      %1957 = vmatmul.mubr.bf16.gmra.mrb[0].mxu0 %v1859
      %v1958 = vpop.f32.mrb[0].mxu0
      %v1959 = vadd.f32 %v1866, %v1958
      %v1960 = vpop.f32.mrb[0].mxu0
      %v1961 = vpop.f32.mrb[0].mxu0
      %v1962 = vadd.f32 %v1866, %v1961
      %v1963 = vpop.f32.mrb[0].mxu0
      %1964 = vmatprep.mubr.bf16.mxu0 0
      %1965 = vmatmul.mubr.bf16.gmra.mrb[0].mxu0 %v1860
      %v1966 = vpop.f32.mrb[0].mxu0
      %v1967 = vadd.f32 %v1866, %v1966
      %v1968 = vpop.f32.mrb[0].mxu0
      %v1969 = vpop.f32.mrb[0].mxu0
      %v1970 = vadd.f32 %v1866, %v1969
      %v1971 = vpop.f32.mrb[0].mxu0
      %1972 = vmatprep.mubr.bf16.mxu0 0
      %1973 = vmatmul.mubr.bf16.gmra.mrb[0].mxu0 %v1861
      %v1974 = vpop.f32.mrb[0].mxu0
      %v1975 = vadd.f32 %v1866, %v1974
      %v1976 = vpop.f32.mrb[0].mxu0
      %v1977 = vpop.f32.mrb[0].mxu0
      %v1978 = vadd.f32 %v1866, %v1977
      %v1979 = vpop.f32.mrb[0].mxu0
      %1980 = vdwg.mxu0
      %v1981 = vmul.f32 %v1951, 4.5
      %v1982 = vmul.f32 %v1954, 4.5
      %v1983 = vmul.f32 %v1959, 4.5
      %v1984 = vmul.f32 %v1962, 4.5
      %v1985 = vmul.f32 %v1967, 4.5
      %v1986 = vmul.f32 %v1970, 4.5
      %v1987 = vmul.f32 %v1975, 4.5
      %v1988 = vmul.f32 %v1978, 4.5
      %v1989 = vmin.f32 %v1981, 20.0
      %v1990 = vmin.f32 %v1982, 20.0
      %v1991 = vmin.f32 %v1983, 20.0
      %v1992 = vmin.f32 %v1984, 20.0
      %v1993 = vmin.f32 %v1985, 20.0
      %v1994 = vmin.f32 %v1986, 20.0
      %v1995 = vmin.f32 %v1987, 20.0
      %v1996 = vmin.f32 %v1988, 20.0
      %vm1997 = vcmp.gt.f32.partialorder %v1981, 20.0
      %vm1998 = vcmp.gt.f32.partialorder %v1982, 20.0
      %vm1999 = vcmp.gt.f32.partialorder %v1983, 20.0
      %vm2000 = vcmp.gt.f32.partialorder %v1984, 20.0
      %vm2001 = vcmp.gt.f32.partialorder %v1985, 20.0
      %vm2002 = vcmp.gt.f32.partialorder %v1986, 20.0
      %vm2003 = vcmp.gt.f32.partialorder %v1987, 20.0
      %vm2004 = vcmp.gt.f32.partialorder %v1988, 20.0
      %v2005 = vmul.f32 %v1989, 1.442695
      %v2006 = vpow.pop %v2005
      %v2007 = vmul.f32 %v1990, 1.442695
      %v2008 = vpow.pop %v2007
      %v2009 = vmul.f32 %v1991, 1.442695
      %v2010 = vpow.pop %v2009
      %v2011 = vmul.f32 %v1992, 1.442695
      %v2012 = vpow.pop %v2011
      %v2013 = vmul.f32 %v1993, 1.442695
      %v2014 = vpow.pop %v2013
      %v2015 = vmul.f32 %v1994, 1.442695
      %v2016 = vpow.pop %v2015
      %v2017 = vmul.f32 %v1995, 1.442695
      %v2018 = vpow.pop %v2017
      %v2019 = vmul.f32 %v1996, 1.442695
      %v2020 = vpow.pop %v2019
      %v2021 = vadd.f32 %v2006, 1.0
      %v2022 = vlog2.pop %v2021
      %v2023 = vmul.f32 %v2022, 0.6931472
      %v2024 = vmul.f32 -0.5, %v2006
      %v2025 = vadd.f32 %v2024, 1.0
      %v2026 = vmul.f32 %v2025, %v2006
      %v2027 = vand.u32 2147483647, %v2006
      %vm2028 = vcmp.lt.f32.partialorder %v2027, 0.0004427343
      %v2029 = vsel %vm2028, %v2026, %v2023
      %v2030 = vadd.f32 %v2008, 1.0
      %v2031 = vlog2.pop %v2030
      %v2032 = vmul.f32 %v2031, 0.6931472
      %v2033 = vmul.f32 -0.5, %v2008
      %v2034 = vadd.f32 %v2033, 1.0
      %v2035 = vmul.f32 %v2034, %v2008
      %v2036 = vand.u32 2147483647, %v2008
      %vm2037 = vcmp.lt.f32.partialorder %v2036, 0.0004427343
      %v2038 = vsel %vm2037, %v2035, %v2032
      %v2039 = vadd.f32 %v2010, 1.0
      %v2040 = vlog2.pop %v2039
      %v2041 = vmul.f32 %v2040, 0.6931472
      %v2042 = vmul.f32 -0.5, %v2010
      %v2043 = vadd.f32 %v2042, 1.0
      %v2044 = vmul.f32 %v2043, %v2010
      %v2045 = vand.u32 2147483647, %v2010
      %vm2046 = vcmp.lt.f32.partialorder %v2045, 0.0004427343
      %v2047 = vsel %vm2046, %v2044, %v2041
      %v2048 = vadd.f32 %v2012, 1.0
      %v2049 = vlog2.pop %v2048
      %v2050 = vmul.f32 %v2049, 0.6931472
      %v2051 = vmul.f32 -0.5, %v2012
      %v2052 = vadd.f32 %v2051, 1.0
      %v2053 = vmul.f32 %v2052, %v2012
      %v2054 = vand.u32 2147483647, %v2012
      %vm2055 = vcmp.lt.f32.partialorder %v2054, 0.0004427343
      %v2056 = vsel %vm2055, %v2053, %v2050
      %v2057 = vadd.f32 %v2014, 1.0
      %v2058 = vlog2.pop %v2057
      %v2059 = vmul.f32 %v2058, 0.6931472
      %v2060 = vmul.f32 -0.5, %v2014
      %v2061 = vadd.f32 %v2060, 1.0
      %v2062 = vmul.f32 %v2061, %v2014
      %v2063 = vand.u32 2147483647, %v2014
      %vm2064 = vcmp.lt.f32.partialorder %v2063, 0.0004427343
      %v2065 = vsel %vm2064, %v2062, %v2059
      %v2066 = vadd.f32 %v2016, 1.0
      %v2067 = vlog2.pop %v2066
      %v2068 = vmul.f32 %v2067, 0.6931472
      %v2069 = vmul.f32 -0.5, %v2016
      %v2070 = vadd.f32 %v2069, 1.0
      %v2071 = vmul.f32 %v2070, %v2016
      %v2072 = vand.u32 2147483647, %v2016
      %vm2073 = vcmp.lt.f32.partialorder %v2072, 0.0004427343
      %v2074 = vsel %vm2073, %v2071, %v2068
      %v2075 = vadd.f32 %v2018, 1.0
      %v2076 = vlog2.pop %v2075
      %v2077 = vmul.f32 %v2076, 0.6931472
      %v2078 = vmul.f32 -0.5, %v2018
      %v2079 = vadd.f32 %v2078, 1.0
      %v2080 = vmul.f32 %v2079, %v2018
      %v2081 = vand.u32 2147483647, %v2018
      %vm2082 = vcmp.lt.f32.partialorder %v2081, 0.0004427343
      %v2083 = vsel %vm2082, %v2080, %v2077
      %v2084 = vadd.f32 %v2020, 1.0
      %v2085 = vlog2.pop %v2084
      %v2086 = vmul.f32 %v2085, 0.6931472
      %v2087 = vmul.f32 -0.5, %v2020
      %v2088 = vadd.f32 %v2087, 1.0
      %v2089 = vmul.f32 %v2088, %v2020
      %v2090 = vand.u32 2147483647, %v2020
      %vm2091 = vcmp.lt.f32.partialorder %v2090, 0.0004427343
      %v2092 = vsel %vm2091, %v2089, %v2086
      %v2093 = vmul.f32 %v2029, %v435
      %v2094 = vmul.f32 %v2038, %v435
      %v2095 = vmul.f32 %v2047, %v435
      %v2096 = vmul.f32 %v2056, %v435
      %v2097 = vmul.f32 %v2065, %v435
      %v2098 = vmul.f32 %v2074, %v435
      %v2099 = vmul.f32 %v2083, %v435
      %v2100 = vmul.f32 %v2092, %v435
      %v2101 = vsel %vm1997, %v1951, %v2093
      %v2102 = vsel %vm1998, %v1954, %v2094
      %v2103 = vsel %vm1999, %v1959, %v2095
      %v2104 = vsel %vm2000, %v1962, %v2096
      %v2105 = vsel %vm2001, %v1967, %v2097
      %v2106 = vsel %vm2002, %v1970, %v2098
      %v2107 = vsel %vm2003, %v1975, %v2099
      %v2108 = vsel %vm2004, %v1978, %v2100
      %v2109 = vld [vmem:[%s1 + $0x1c] sm:$0xf]
      %v2110 = vld [vmem:[%s1 + $0x3c] sm:$0xf]
      %v2111 = vld [vmem:[%s1 + $0x5c] sm:$0xf]
      %v2112 = vld [vmem:[%s1 + $0x7c] sm:$0xf]
      %v2113 = vld [vmem:[%s1 + $0x9c] sm:$0xf]
      %v2114 = vld [vmem:[%s1 + $0xbc] sm:$0xf]
      %v2115 = vld [vmem:[%s1 + $0xdc] sm:$0xf]
      %v2116 = vld [vmem:[%s1 + $0xfc] sm:$0xf]
      %v2117 = vld [vmem:[%s1 + $0x11c] sm:$0xf]
      %v2118 = vld [vmem:[%s1 + $0x13c] sm:$0xf]
      %v2119 = vld [vmem:[%s1 + $0x15c] sm:$0xf]
      %v2120 = vld [vmem:[%s1 + $0x17c] sm:$0xf]
      %v2121 = vld [vmem:[%s1 + $0x19c] sm:$0xf]
      %v2122 = vld [vmem:[%s1 + $0x1bc] sm:$0xf]
      %v2123 = vld [vmem:[%s1 + $0x1dc] sm:$0xf]
      %v2124 = vld [vmem:[%s1 + $0x1fc] sm:$0xf]
      %v2125 = vld [vmem:[%s2 + $0x7] sm:$0x1]
      %v2126 = vpack.c.bf16 %v2102, %v2101
      %v2127 = vpack.c.bf16 %v2104, %v2103
      %v2128 = vpack.c.bf16 %v2106, %v2105
      %v2129 = vpack.c.bf16 %v2108, %v2107
      %v2131 = vlaneseq
      %v2132 = vshrl.u32 %v2131, 7
      %v2133 = vsub.s32 0, %v2132
      %v2134 = vrot.slane %v2125, %v2133
      %v2152 = vunpack.c.l.b16 %v2109
      %v2153 = vunpack.c.l.b16 %v2110
      %v2154 = vunpack.c.l.b16 %v2111
      %v2155 = vunpack.c.l.b16 %v2112
      %v2156 = vunpack.c.l.b16 %v2113
      %v2157 = vunpack.c.l.b16 %v2114
      %v2158 = vunpack.c.l.b16 %v2115
      %v2159 = vunpack.c.l.b16 %v2116
      %v2160 = vunpack.c.l.b16 %v2117
      %v2161 = vunpack.c.l.b16 %v2118
      %v2162 = vunpack.c.l.b16 %v2119
      %v2163 = vunpack.c.l.b16 %v2120
      %v2164 = vunpack.c.l.b16 %v2121
      %v2165 = vunpack.c.l.b16 %v2122
      %v2166 = vunpack.c.l.b16 %v2123
      %v2167 = vunpack.c.l.b16 %v2124
      %v2168 = vpack.c.b16 %v2153, %v2152
      %v2169 = vpack.c.b16 %v2155, %v2154
      %v2170 = vpack.c.b16 %v2157, %v2156
      %v2171 = vpack.c.b16 %v2159, %v2158
      %v2172 = vpack.c.b16 %v2161, %v2160
      %v2173 = vpack.c.b16 %v2163, %v2162
      %v2174 = vpack.c.b16 %v2165, %v2164
      %v2175 = vpack.c.b16 %v2167, %v2166
      %2184 = vmatprep.subr.bf16.mxu0 0
      %2185 = vmatpush1.bf16.msra.mxu0 %v2168
      %2186 = vmatprep.subr.bf16.mxu0 0
      %2187 = vmatpush1.bf16.msra.mxu0 %v2169
      %2188 = vmatprep.subr.bf16.mxu0 0
      %2189 = vmatpush1.bf16.msra.mxu0 %v2170
      %2190 = vmatprep.subr.bf16.mxu0 0
      %2191 = vmatpush1.bf16.msra.mxu0 %v2171
      %2192 = vmatprep.subr.bf16.mxu0 0
      %2193 = vmatpush1.bf16.msra.mxu0 %v2172
      %2194 = vmatprep.subr.bf16.mxu0 0
      %2195 = vmatpush1.bf16.msra.mxu0 %v2173
      %2196 = vmatprep.subr.bf16.mxu0 0
      %2197 = vmatpush1.bf16.msra.mxu0 %v2174
      %2198 = vmatprep.subr.bf16.mxu0 0
      %2199 = vmatpush1.bf16.msra.mxu0 %v2175
      %2200 = vmatprep.subr.bf16.mxu0 0
      %2201 = vmatpush1.bf16.msra.mxu0 0
      %2202 = vmatprep.subr.bf16.mxu0 0
      %2203 = vmatpush1.bf16.msra.mxu0 0
      %2204 = vmatprep.subr.bf16.mxu0 0
      %2205 = vmatpush1.bf16.msra.mxu0 0
      %2206 = vmatprep.subr.bf16.mxu0 0
      %2207 = vmatpush1.bf16.msra.mxu0 0
      %2208 = vmatprep.subr.bf16.mxu0 0
      %2209 = vmatpush1.bf16.msra.mxu0 0
      %2210 = vmatprep.subr.bf16.mxu0 0
      %2211 = vmatpush1.bf16.msra.mxu0 0
      %2212 = vmatprep.subr.bf16.mxu0 0
      %2213 = vmatpush1.bf16.msra.mxu0 0
      %2214 = vmatprep.subr.bf16.mxu0 0
      %2215 = vmatpush1.bf16.msra.mxu0 0
      %2216 = vmatprep.mubr.bf16.mxu0 0
      %2217 = vmatmul.mubr.bf16.gmra.mrb[0].mxu0 %v2126
      %v2218 = vpop.f32.mrb[0].mxu0
      %v2219 = vadd.f32 %v2134, %v2218
      %v2220 = vpop.f32.mrb[0].mxu0
      %v2221 = vpop.f32.mrb[0].mxu0
      %v2222 = vadd.f32 %v2134, %v2221
      %v2223 = vpop.f32.mrb[0].mxu0
      %2224 = vmatprep.mubr.bf16.mxu0 0
      %2225 = vmatmul.mubr.bf16.gmra.mrb[0].mxu0 %v2127
      %v2226 = vpop.f32.mrb[0].mxu0
      %v2227 = vadd.f32 %v2134, %v2226
      %v2228 = vpop.f32.mrb[0].mxu0
      %v2229 = vpop.f32.mrb[0].mxu0
      %v2230 = vadd.f32 %v2134, %v2229
      %v2231 = vpop.f32.mrb[0].mxu0
      %2232 = vmatprep.mubr.bf16.mxu0 0
      %2233 = vmatmul.mubr.bf16.gmra.mrb[0].mxu0 %v2128
      %v2234 = vpop.f32.mrb[0].mxu0
      %v2235 = vadd.f32 %v2134, %v2234
      %v2236 = vpop.f32.mrb[0].mxu0
      %v2237 = vpop.f32.mrb[0].mxu0
      %v2238 = vadd.f32 %v2134, %v2237
      %v2239 = vpop.f32.mrb[0].mxu0
      %2240 = vmatprep.mubr.bf16.mxu0 0
      %2241 = vmatmul.mubr.bf16.gmra.mrb[0].mxu0 %v2129
      %v2242 = vpop.f32.mrb[0].mxu0
      %v2243 = vadd.f32 %v2134, %v2242
      %v2244 = vpop.f32.mrb[0].mxu0
      %v2245 = vpop.f32.mrb[0].mxu0
      %v2246 = vadd.f32 %v2134, %v2245
      %v2247 = vpop.f32.mrb[0].mxu0
      %2248 = vdwg.mxu0
      %vm2249 = vcmask 326656
      %2250 = vst.msk [vmem:[%s172] sm:$0xff] %vm2249, %v2219
      %2251 = vst.msk [vmem:[%s172 + $0x8] sm:$0xff] %vm2249, %v2222
      %2252 = vst.msk [vmem:[%s172 + $0x10] sm:$0xff] %vm2249, %v2227
      %2253 = vst.msk [vmem:[%s172 + $0x18] sm:$0xff] %vm2249, %v2230
      %2254 = vst.msk [vmem:[%s172 + $0x20] sm:$0xff] %vm2249, %v2235
      %2255 = vst.msk [vmem:[%s172 + $0x28] sm:$0xff] %vm2249, %v2238
      %2256 = vst.msk [vmem:[%s172 + $0x30] sm:$0xff] %vm2249, %v2243
      %2257 = vst.msk [vmem:[%s172 + $0x38] sm:$0xff] %vm2249, %v2246
      %s2258 = smul.u32 8, %s14
      %p2259 = scmp.lt.s32.totalorder %s2258, 15
      %s2260 = scalar_select %p2259, %s2258, 15
      %s2261 = smul.addr %s2260, 8
      %s2262 = scalar_lea.vmem %s3, %s2261
      // Predicated region
      $region33: #{neural_vae_forward.1} parent=31 // pred_check
        %p2263 = pneg %p100
      $region34: #{neural_vae_forward.1} parent=31 // pred_check_branch
        %2265 = sbr.rel (%p2263) target = $region36
      $region35: #{neural_vae_forward.1} parent=31 // pred_region
        %s2266 = smul.u32 8, %s14
      $region36: #{neural_vae_forward.1} parent=31 // pred_fallthru
        _
    $region32: #{neural_vae_forward.1} parent=5 // pred_fallthru
      _
    %p2267 = scmp.le.s32.totalorder 2, %s9
    // Predicated region
    $region37: #{neural_vae_forward.1} parent=5 // pred_check
      %p2268 = pneg %p2267
    $region38: #{neural_vae_forward.1} parent=5 // pred_check_branch
      %2270 = sbr.rel (%p2268) target = $region40
    $region39: #{neural_vae_forward.1} parent=5 // pred_region
      %s2271 = ssub.s32 %s9, 2
      // Predicated region
      $region41: #{neural_vae_forward.1} parent=39 // pred_check
        %p2272 = pneg %p106
      $region42: #{neural_vae_forward.1} parent=39 // pred_check_branch
        %2274 = sbr.rel (%p2272) target = $region44
      $region43: #{neural_vae_forward.1} parent=39 // pred_region
        %s2275 = smul.u32 8, %s15
        %p2276 = scmp.lt.s32.totalorder %s2275, 15
        %s2277 = scalar_select %p2276, %s2275, 15
        %s2278 = smul.addr %s2277, 8
        %s2279 = scalar_lea.vmem %s3, %s2278
      $region44: #{neural_vae_forward.1} parent=39 // pred_fallthru
        _
    $region40: #{neural_vae_forward.1} parent=5 // pred_fallthru
      _
  $region6: #{neural_vae_forward.1} parent=0 // loop_footer
    %s13 = sadd.s32 1, %s9
  $region7: #{neural_vae_forward.1} parent=0 // loop_footer_branch
    %8 = sbr.rel target = $region3
  $region8: #{neural_vae_forward.1} parent=0 // loop_exit
    _

</llo_original>
